<compile_context>
chip_gen: v5e
topology: v5e:2x2
jax: 0.10.0
libtpu: 0.0.40
codegen_flags: <defaults>
</compile_context>

<pallas_src>
import jax
import jax.numpy as jnp
from jax.experimental import pallas as pl
from jax.experimental.pallas import tpu as pltpu


# ----------------------------------------------------------------------------
# Parameters
# ----------------------------------------------------------------------------
def init_params(key, embedding_size, hidden_size, num_classes=10):
    dims_in = [embedding_size, hidden_size, hidden_size, hidden_size]
    params = {"qrnn": []}
    for i, d_in in enumerate(dims_in):
        k0, k1, kb = jax.random.split(jax.random.fold_in(key, i), 3)
        scale = 1.0 / jnp.sqrt(jnp.float32(d_in * 2))
        params["qrnn"].append({
            # stacked per gate: index 0 = z, 1 = f, 2 = o
            "w0": jax.random.normal(k0, (3, d_in, hidden_size), jnp.float32) * scale,
            "w1": jax.random.normal(k1, (3, d_in, hidden_size), jnp.float32) * scale,
            "b":  jax.random.normal(kb, (3, 1, hidden_size), jnp.float32) * 0.01,
        })
    kw, kb2 = jax.random.split(jax.random.fold_in(key, 99))
    params["cls_w"] = jax.random.normal(
        kw, (hidden_size, num_classes), jnp.float32) / jnp.sqrt(jnp.float32(hidden_size))
    params["cls_b"] = jax.random.normal(kb2, (1, num_classes), jnp.float32) * 0.01
    return params


# ----------------------------------------------------------------------------
# Fused forward pass: 4 QRNN layers + linear head in ONE Pallas kernel
# ----------------------------------------------------------------------------
def classifier_forward(params, x_sbe):
    S, B, E = x_sbe.shape
    H = params["qrnn"][0]["w0"].shape[-1]
    NC = params["cls_w"].shape[-1]

    # ---- host-side packing: fuse the 3 gates along lanes (z|f|o) per tap ----
    def pack_gates(layer):
        w0 = jnp.concatenate([layer["w0"][g] for g in range(3)], axis=1)  # (d_in, 3H)
        w1 = jnp.concatenate([layer["w1"][g] for g in range(3)], axis=1)  # (d_in, 3H)
        b = jnp.concatenate([layer["b"][g] for g in range(3)], axis=1)    # (1, 3H)
        return w0, w1, b

    w0_1, w1_1, b_1 = pack_gates(params["qrnn"][0])
    # layer 1: concatenate both conv taps along K -> single (2E, 3H) weight
    w_l1 = jnp.concatenate([w0_1, w1_1], axis=0).astype(jnp.bfloat16)
    # layers 2-4 (all d_in == H): stack per-tap weights and biases
    packed_rest = [pack_gates(params["qrnn"][l]) for l in (1, 2, 3)]
    wr0 = jnp.stack([p[0] for p in packed_rest]).astype(jnp.bfloat16)     # (3, H, 3H)
    wr1 = jnp.stack([p[1] for p in packed_rest]).astype(jnp.bfloat16)     # (3, H, 3H)
    br = jnp.stack([p[2] for p in packed_rest])                           # (3, 1, 3H) f32
    cw = params["cls_w"].astype(jnp.bfloat16)
    cb = params["cls_b"]

    # layer-1 causal shift + tap concat done on the host: [x_{t-1} | x_t]
    x_prev0 = jnp.concatenate([jnp.zeros((1, B, E), x_sbe.dtype), x_sbe[:-1]], axis=0)
    x_cat1 = jnp.concatenate([x_prev0, x_sbe], axis=-1)                   # (S, B, 2E)
    x_cat1 = x_cat1.reshape(S * B, 2 * E).astype(jnp.bfloat16)

    def kernel(x_ref, wl1_ref, b1_ref, wr0_ref, wr1_ref, br_ref,
               cw_ref, cb_ref, out_ref):

        def fo_pool(pre, c0):
            # gates as static lane ranges of the fused (S*B, 3H) pre-activation
            z = jnp.tanh(pre[:, 0:H])
            f = jax.nn.sigmoid(pre[:, H:2 * H])
            o = jax.nn.sigmoid(pre[:, 2 * H:3 * H])
            c = c0
            hs = []
            for t in range(S):                     # statically unrolled (S small)
                sl = slice(t * B, (t + 1) * B)
                c = f[sl] * c + (1.0 - f[sl]) * z[sl]
                hs.append(o[sl] * c)
            return hs, c

        # ---- layer 1: one fused (S*B, 2E) @ (2E, 3H) bf16 MXU dot ----
        pre = jnp.dot(x_ref[...], wl1_ref[...],
                      preferred_element_type=jnp.float32) + b1_ref[...]
        hs, c = fo_pool(pre, jnp.zeros((B, H), jnp.float32))

        # ---- layers 2-4: two fused-gate dots each (t-1 tap and t tap) ----
        zero_blk = jnp.zeros((B, H), jnp.float32)
        for l in range(3):
            # next layer's input, assembled once (no per-step masked ref stores)
            x_cur = jnp.concatenate(hs, axis=0).astype(jnp.bfloat16)             # (S*B, H)
            x_prv = jnp.concatenate([zero_blk] + hs[:-1], axis=0).astype(jnp.bfloat16)
            pre = (jnp.dot(x_prv, wr0_ref[l], preferred_element_type=jnp.float32)
                   + jnp.dot(x_cur, wr1_ref[l], preferred_element_type=jnp.float32)
                   + br_ref[l])
            # cell state c is chained to the next layer; h ignored (see TODO above)
            hs, c = fo_pool(pre, c)

        # ---- classifier head on the final hidden state ----
        h_last = hs[-1].astype(jnp.bfloat16)                                      # (B, H)
        out_ref[...] = (jnp.dot(h_last, cw_ref[...],
                                preferred_element_type=jnp.float32) + cb_ref[...])

    vmem = pl.BlockSpec(memory_space=pltpu.MemorySpace.VMEM)
    return pl.pallas_call(
        kernel,
        out_shape=jax.ShapeDtypeStruct((B, NC), jnp.float32),
        in_specs=[vmem] * 8,
        out_specs=vmem,
    )(x_cat1, w_l1, b_1, wr0, wr1, br, cw, cb)


# ----------------------------------------------------------------------------
if __name__ == "__main__":
    SEQ, BATCH, EMB, HID = 8, 2, 32, 32
    key = jax.random.PRNGKey(0)
    kx, kp = jax.random.split(key)

    x = jax.random.normal(kx, (SEQ, BATCH, EMB), jnp.float32)   # (S, B, E)
    params = init_params(kp, EMB, HID)

    logits = classifier_forward(params, x)
    jax.block_until_ready(logits)
    assert logits.shape == (BATCH, 10), logits.shape
    print("KERNEL_OK")
</pallas_src>

<mosaic_0001>
module attributes {stable_mosaic.version = 11 : i64} {
  func.func @kernel(%arg0: memref<16x64xbf16, #tpu.memory_space<vmem>>, %arg1: memref<64x96xbf16, #tpu.memory_space<vmem>>, %arg2: memref<1x96xf32, #tpu.memory_space<vmem>>, %arg3: memref<3x32x96xbf16, #tpu.memory_space<vmem>>, %arg4: memref<3x32x96xbf16, #tpu.memory_space<vmem>>, %arg5: memref<3x1x96xf32, #tpu.memory_space<vmem>>, %arg6: memref<32x10xbf16, #tpu.memory_space<vmem>>, %arg7: memref<1x10xf32, #tpu.memory_space<vmem>>, %arg8: memref<2x10xf32, #tpu.memory_space<vmem>>) attributes {dimension_semantics = [], scalar_prefetch = 0 : i64, scratch_operands = 0 : i64, tpu.core_type = #tpu.core_type<tc>} {
    %c0 = arith.constant 0 : index
    %c0_0 = arith.constant 0 : index
    %0 = vector.load %arg0[%c0, %c0_0] : memref<16x64xbf16, #tpu.memory_space<vmem>>, vector<16x64xbf16>
    %c0_1 = arith.constant 0 : index
    %c0_2 = arith.constant 0 : index
    %1 = vector.load %arg1[%c0_1, %c0_2] : memref<64x96xbf16, #tpu.memory_space<vmem>>, vector<64x96xbf16>
    %cst = arith.constant dense<0.000000e+00> : vector<16x96xf32>
    %2 = tpu.matmul %0, %1, %cst {dimension_numbers = #tpu.dot_dimension_numbers<[1], [0], [0], [1], [0, 0, 1, 1], [], []>} : vector<16x64xbf16>, vector<64x96xbf16>, vector<16x96xf32> -> vector<16x96xf32>
    %c0_3 = arith.constant 0 : index
    %c0_4 = arith.constant 0 : index
    %3 = vector.load %arg2[%c0_3, %c0_4] : memref<1x96xf32, #tpu.memory_space<vmem>>, vector<1x96xf32>
    %4 = vector.broadcast %3 : vector<1x96xf32> to vector<16x96xf32>
    %5 = arith.addf %2, %4 : vector<16x96xf32>
    %cst_5 = arith.constant 0.000000e+00 : f32
    %6 = vector.broadcast %cst_5 : f32 to vector<2x32xf32>
    %7 = vector.extract_strided_slice %5 {offsets = [0, 0], sizes = [16, 32], strides = [1, 1]} : vector<16x96xf32> to vector<16x32xf32>
    %8 = math.tanh %7 : vector<16x32xf32>
    %9 = vector.extract_strided_slice %5 {offsets = [0, 32], sizes = [16, 32], strides = [1, 1]} : vector<16x96xf32> to vector<16x32xf32>
    %10 = arith.negf %9 : vector<16x32xf32>
    %11 = math.exp %10 : vector<16x32xf32>
    %cst_6 = arith.constant 1.000000e+00 : f32
    %12 = vector.broadcast %cst_6 : f32 to vector<16x32xf32>
    %13 = arith.addf %12, %11 : vector<16x32xf32>
    %14 = arith.divf %12, %13 : vector<16x32xf32>
    %15 = vector.extract_strided_slice %5 {offsets = [0, 64], sizes = [16, 32], strides = [1, 1]} : vector<16x96xf32> to vector<16x32xf32>
    %16 = arith.negf %15 : vector<16x32xf32>
    %17 = math.exp %16 : vector<16x32xf32>
    %cst_7 = arith.constant 1.000000e+00 : f32
    %18 = vector.broadcast %cst_7 : f32 to vector<16x32xf32>
    %19 = arith.addf %18, %17 : vector<16x32xf32>
    %20 = arith.divf %18, %19 : vector<16x32xf32>
    %21 = vector.extract_strided_slice %14 {offsets = [0, 0], sizes = [2, 32], strides = [1, 1]} : vector<16x32xf32> to vector<2x32xf32>
    %22 = arith.mulf %21, %6 : vector<2x32xf32>
    %23 = vector.extract_strided_slice %14 {offsets = [0, 0], sizes = [2, 32], strides = [1, 1]} : vector<16x32xf32> to vector<2x32xf32>
    %cst_8 = arith.constant 1.000000e+00 : f32
    %24 = vector.broadcast %cst_8 : f32 to vector<2x32xf32>
    %25 = arith.subf %24, %23 : vector<2x32xf32>
    %26 = vector.extract_strided_slice %8 {offsets = [0, 0], sizes = [2, 32], strides = [1, 1]} : vector<16x32xf32> to vector<2x32xf32>
    %27 = arith.mulf %25, %26 : vector<2x32xf32>
    %28 = arith.addf %22, %27 : vector<2x32xf32>
    %29 = vector.extract_strided_slice %20 {offsets = [0, 0], sizes = [2, 32], strides = [1, 1]} : vector<16x32xf32> to vector<2x32xf32>
    %30 = arith.mulf %29, %28 : vector<2x32xf32>
    %31 = vector.extract_strided_slice %14 {offsets = [2, 0], sizes = [2, 32], strides = [1, 1]} : vector<16x32xf32> to vector<2x32xf32>
    %32 = arith.mulf %31, %28 : vector<2x32xf32>
    %33 = vector.extract_strided_slice %14 {offsets = [2, 0], sizes = [2, 32], strides = [1, 1]} : vector<16x32xf32> to vector<2x32xf32>
    %cst_9 = arith.constant 1.000000e+00 : f32
    %34 = vector.broadcast %cst_9 : f32 to vector<2x32xf32>
    %35 = arith.subf %34, %33 : vector<2x32xf32>
    %36 = vector.extract_strided_slice %8 {offsets = [2, 0], sizes = [2, 32], strides = [1, 1]} : vector<16x32xf32> to vector<2x32xf32>
    %37 = arith.mulf %35, %36 : vector<2x32xf32>
    %38 = arith.addf %32, %37 : vector<2x32xf32>
    %39 = vector.extract_strided_slice %20 {offsets = [2, 0], sizes = [2, 32], strides = [1, 1]} : vector<16x32xf32> to vector<2x32xf32>
    %40 = arith.mulf %39, %38 : vector<2x32xf32>
    %41 = vector.extract_strided_slice %14 {offsets = [4, 0], sizes = [2, 32], strides = [1, 1]} : vector<16x32xf32> to vector<2x32xf32>
    %42 = arith.mulf %41, %38 : vector<2x32xf32>
    %43 = vector.extract_strided_slice %14 {offsets = [4, 0], sizes = [2, 32], strides = [1, 1]} : vector<16x32xf32> to vector<2x32xf32>
    %cst_10 = arith.constant 1.000000e+00 : f32
    %44 = vector.broadcast %cst_10 : f32 to vector<2x32xf32>
    %45 = arith.subf %44, %43 : vector<2x32xf32>
    %46 = vector.extract_strided_slice %8 {offsets = [4, 0], sizes = [2, 32], strides = [1, 1]} : vector<16x32xf32> to vector<2x32xf32>
    %47 = arith.mulf %45, %46 : vector<2x32xf32>
    %48 = arith.addf %42, %47 : vector<2x32xf32>
    %49 = vector.extract_strided_slice %20 {offsets = [4, 0], sizes = [2, 32], strides = [1, 1]} : vector<16x32xf32> to vector<2x32xf32>
    %50 = arith.mulf %49, %48 : vector<2x32xf32>
    %51 = vector.extract_strided_slice %14 {offsets = [6, 0], sizes = [2, 32], strides = [1, 1]} : vector<16x32xf32> to vector<2x32xf32>
    %52 = arith.mulf %51, %48 : vector<2x32xf32>
    %53 = vector.extract_strided_slice %14 {offsets = [6, 0], sizes = [2, 32], strides = [1, 1]} : vector<16x32xf32> to vector<2x32xf32>
    %cst_11 = arith.constant 1.000000e+00 : f32
    %54 = vector.broadcast %cst_11 : f32 to vector<2x32xf32>
    %55 = arith.subf %54, %53 : vector<2x32xf32>
    %56 = vector.extract_strided_slice %8 {offsets = [6, 0], sizes = [2, 32], strides = [1, 1]} : vector<16x32xf32> to vector<2x32xf32>
    %57 = arith.mulf %55, %56 : vector<2x32xf32>
    %58 = arith.addf %52, %57 : vector<2x32xf32>
    %59 = vector.extract_strided_slice %20 {offsets = [6, 0], sizes = [2, 32], strides = [1, 1]} : vector<16x32xf32> to vector<2x32xf32>
    %60 = arith.mulf %59, %58 : vector<2x32xf32>
    %61 = vector.extract_strided_slice %14 {offsets = [8, 0], sizes = [2, 32], strides = [1, 1]} : vector<16x32xf32> to vector<2x32xf32>
    %62 = arith.mulf %61, %58 : vector<2x32xf32>
    %63 = vector.extract_strided_slice %14 {offsets = [8, 0], sizes = [2, 32], strides = [1, 1]} : vector<16x32xf32> to vector<2x32xf32>
    %cst_12 = arith.constant 1.000000e+00 : f32
    %64 = vector.broadcast %cst_12 : f32 to vector<2x32xf32>
    %65 = arith.subf %64, %63 : vector<2x32xf32>
    %66 = vector.extract_strided_slice %8 {offsets = [8, 0], sizes = [2, 32], strides = [1, 1]} : vector<16x32xf32> to vector<2x32xf32>
    %67 = arith.mulf %65, %66 : vector<2x32xf32>
    %68 = arith.addf %62, %67 : vector<2x32xf32>
    %69 = vector.extract_strided_slice %20 {offsets = [8, 0], sizes = [2, 32], strides = [1, 1]} : vector<16x32xf32> to vector<2x32xf32>
    %70 = arith.mulf %69, %68 : vector<2x32xf32>
    %71 = vector.extract_strided_slice %14 {offsets = [10, 0], sizes = [2, 32], strides = [1, 1]} : vector<16x32xf32> to vector<2x32xf32>
    %72 = arith.mulf %71, %68 : vector<2x32xf32>
    %73 = vector.extract_strided_slice %14 {offsets = [10, 0], sizes = [2, 32], strides = [1, 1]} : vector<16x32xf32> to vector<2x32xf32>
    %cst_13 = arith.constant 1.000000e+00 : f32
    %74 = vector.broadcast %cst_13 : f32 to vector<2x32xf32>
    %75 = arith.subf %74, %73 : vector<2x32xf32>
    %76 = vector.extract_strided_slice %8 {offsets = [10, 0], sizes = [2, 32], strides = [1, 1]} : vector<16x32xf32> to vector<2x32xf32>
    %77 = arith.mulf %75, %76 : vector<2x32xf32>
    %78 = arith.addf %72, %77 : vector<2x32xf32>
    %79 = vector.extract_strided_slice %20 {offsets = [10, 0], sizes = [2, 32], strides = [1, 1]} : vector<16x32xf32> to vector<2x32xf32>
    %80 = arith.mulf %79, %78 : vector<2x32xf32>
    %81 = vector.extract_strided_slice %14 {offsets = [12, 0], sizes = [2, 32], strides = [1, 1]} : vector<16x32xf32> to vector<2x32xf32>
    %82 = arith.mulf %81, %78 : vector<2x32xf32>
    %83 = vector.extract_strided_slice %14 {offsets = [12, 0], sizes = [2, 32], strides = [1, 1]} : vector<16x32xf32> to vector<2x32xf32>
    %cst_14 = arith.constant 1.000000e+00 : f32
    %84 = vector.broadcast %cst_14 : f32 to vector<2x32xf32>
    %85 = arith.subf %84, %83 : vector<2x32xf32>
    %86 = vector.extract_strided_slice %8 {offsets = [12, 0], sizes = [2, 32], strides = [1, 1]} : vector<16x32xf32> to vector<2x32xf32>
    %87 = arith.mulf %85, %86 : vector<2x32xf32>
    %88 = arith.addf %82, %87 : vector<2x32xf32>
    %89 = vector.extract_strided_slice %20 {offsets = [12, 0], sizes = [2, 32], strides = [1, 1]} : vector<16x32xf32> to vector<2x32xf32>
    %90 = arith.mulf %89, %88 : vector<2x32xf32>
    %91 = vector.extract_strided_slice %14 {offsets = [14, 0], sizes = [2, 32], strides = [1, 1]} : vector<16x32xf32> to vector<2x32xf32>
    %92 = arith.mulf %91, %88 : vector<2x32xf32>
    %93 = vector.extract_strided_slice %14 {offsets = [14, 0], sizes = [2, 32], strides = [1, 1]} : vector<16x32xf32> to vector<2x32xf32>
    %cst_15 = arith.constant 1.000000e+00 : f32
    %94 = vector.broadcast %cst_15 : f32 to vector<2x32xf32>
    %95 = arith.subf %94, %93 : vector<2x32xf32>
    %96 = vector.extract_strided_slice %8 {offsets = [14, 0], sizes = [2, 32], strides = [1, 1]} : vector<16x32xf32> to vector<2x32xf32>
    %97 = arith.mulf %95, %96 : vector<2x32xf32>
    %98 = arith.addf %92, %97 : vector<2x32xf32>
    %99 = vector.extract_strided_slice %20 {offsets = [14, 0], sizes = [2, 32], strides = [1, 1]} : vector<16x32xf32> to vector<2x32xf32>
    %100 = arith.mulf %99, %98 : vector<2x32xf32>
    %cst_16 = arith.constant 0.000000e+00 : f32
    %101 = vector.broadcast %cst_16 : f32 to vector<2x32xf32>
    %102 = tpu.concatenate %30, %40, %50, %60, %70, %80, %90, %100 in 0 : vector<2x32xf32>, vector<2x32xf32>, vector<2x32xf32>, vector<2x32xf32>, vector<2x32xf32>, vector<2x32xf32>, vector<2x32xf32>, vector<2x32xf32> -> vector<16x32xf32>
    %103 = arith.truncf %102 : vector<16x32xf32> to vector<16x32xbf16>
    %104 = tpu.concatenate %101, %30, %40, %50, %60, %70, %80, %90 in 0 : vector<2x32xf32>, vector<2x32xf32>, vector<2x32xf32>, vector<2x32xf32>, vector<2x32xf32>, vector<2x32xf32>, vector<2x32xf32>, vector<2x32xf32> -> vector<16x32xf32>
    %105 = arith.truncf %104 : vector<16x32xf32> to vector<16x32xbf16>
    %c0_17 = arith.constant 0 : index
    %c0_18 = arith.constant 0 : index
    %c0_19 = arith.constant 0 : index
    %106 = vector.load %arg3[%c0_17, %c0_18, %c0_19] : memref<3x32x96xbf16, #tpu.memory_space<vmem>>, vector<1x32x96xbf16>
    %107 = vector.shape_cast %106 : vector<1x32x96xbf16> to vector<32x96xbf16>
    %cst_20 = arith.constant dense<0.000000e+00> : vector<16x96xf32>
    %108 = tpu.matmul %105, %107, %cst_20 {dimension_numbers = #tpu.dot_dimension_numbers<[1], [0], [0], [1], [0, 0, 1, 1], [], []>} : vector<16x32xbf16>, vector<32x96xbf16>, vector<16x96xf32> -> vector<16x96xf32>
    %c0_21 = arith.constant 0 : index
    %c0_22 = arith.constant 0 : index
    %c0_23 = arith.constant 0 : index
    %109 = vector.load %arg4[%c0_21, %c0_22, %c0_23] : memref<3x32x96xbf16, #tpu.memory_space<vmem>>, vector<1x32x96xbf16>
    %110 = vector.shape_cast %109 : vector<1x32x96xbf16> to vector<32x96xbf16>
    %cst_24 = arith.constant dense<0.000000e+00> : vector<16x96xf32>
    %111 = tpu.matmul %103, %110, %cst_24 {dimension_numbers = #tpu.dot_dimension_numbers<[1], [0], [0], [1], [0, 0, 1, 1], [], []>} : vector<16x32xbf16>, vector<32x96xbf16>, vector<16x96xf32> -> vector<16x96xf32>
    %112 = arith.addf %108, %111 : vector<16x96xf32>
    %c0_25 = arith.constant 0 : index
    %c0_26 = arith.constant 0 : index
    %c0_27 = arith.constant 0 : index
    %113 = vector.load %arg5[%c0_25, %c0_26, %c0_27] : memref<3x1x96xf32, #tpu.memory_space<vmem>>, vector<1x1x96xf32>
    %114 = vector.shape_cast %113 : vector<1x1x96xf32> to vector<1x96xf32>
    %115 = vector.broadcast %114 : vector<1x96xf32> to vector<16x96xf32>
    %116 = arith.addf %112, %115 : vector<16x96xf32>
    %117 = vector.extract_strided_slice %116 {offsets = [0, 0], sizes = [16, 32], strides = [1, 1]} : vector<16x96xf32> to vector<16x32xf32>
    %118 = math.tanh %117 : vector<16x32xf32>
    %119 = vector.extract_strided_slice %116 {offsets = [0, 32], sizes = [16, 32], strides = [1, 1]} : vector<16x96xf32> to vector<16x32xf32>
    %120 = arith.negf %119 : vector<16x32xf32>
    %121 = math.exp %120 : vector<16x32xf32>
    %cst_28 = arith.constant 1.000000e+00 : f32
    %122 = vector.broadcast %cst_28 : f32 to vector<16x32xf32>
    %123 = arith.addf %122, %121 : vector<16x32xf32>
    %124 = arith.divf %122, %123 : vector<16x32xf32>
    %125 = vector.extract_strided_slice %116 {offsets = [0, 64], sizes = [16, 32], strides = [1, 1]} : vector<16x96xf32> to vector<16x32xf32>
    %126 = arith.negf %125 : vector<16x32xf32>
    %127 = math.exp %126 : vector<16x32xf32>
    %cst_29 = arith.constant 1.000000e+00 : f32
    %128 = vector.broadcast %cst_29 : f32 to vector<16x32xf32>
    %129 = arith.addf %128, %127 : vector<16x32xf32>
    %130 = arith.divf %128, %129 : vector<16x32xf32>
    %131 = vector.extract_strided_slice %124 {offsets = [0, 0], sizes = [2, 32], strides = [1, 1]} : vector<16x32xf32> to vector<2x32xf32>
    %132 = arith.mulf %131, %98 : vector<2x32xf32>
    %133 = vector.extract_strided_slice %124 {offsets = [0, 0], sizes = [2, 32], strides = [1, 1]} : vector<16x32xf32> to vector<2x32xf32>
    %cst_30 = arith.constant 1.000000e+00 : f32
    %134 = vector.broadcast %cst_30 : f32 to vector<2x32xf32>
    %135 = arith.subf %134, %133 : vector<2x32xf32>
    %136 = vector.extract_strided_slice %118 {offsets = [0, 0], sizes = [2, 32], strides = [1, 1]} : vector<16x32xf32> to vector<2x32xf32>
    %137 = arith.mulf %135, %136 : vector<2x32xf32>
    %138 = arith.addf %132, %137 : vector<2x32xf32>
    %139 = vector.extract_strided_slice %130 {offsets = [0, 0], sizes = [2, 32], strides = [1, 1]} : vector<16x32xf32> to vector<2x32xf32>
    %140 = arith.mulf %139, %138 : vector<2x32xf32>
    %141 = vector.extract_strided_slice %124 {offsets = [2, 0], sizes = [2, 32], strides = [1, 1]} : vector<16x32xf32> to vector<2x32xf32>
    %142 = arith.mulf %141, %138 : vector<2x32xf32>
    %143 = vector.extract_strided_slice %124 {offsets = [2, 0], sizes = [2, 32], strides = [1, 1]} : vector<16x32xf32> to vector<2x32xf32>
    %cst_31 = arith.constant 1.000000e+00 : f32
    %144 = vector.broadcast %cst_31 : f32 to vector<2x32xf32>
    %145 = arith.subf %144, %143 : vector<2x32xf32>
    %146 = vector.extract_strided_slice %118 {offsets = [2, 0], sizes = [2, 32], strides = [1, 1]} : vector<16x32xf32> to vector<2x32xf32>
    %147 = arith.mulf %145, %146 : vector<2x32xf32>
    %148 = arith.addf %142, %147 : vector<2x32xf32>
    %149 = vector.extract_strided_slice %130 {offsets = [2, 0], sizes = [2, 32], strides = [1, 1]} : vector<16x32xf32> to vector<2x32xf32>
    %150 = arith.mulf %149, %148 : vector<2x32xf32>
    %151 = vector.extract_strided_slice %124 {offsets = [4, 0], sizes = [2, 32], strides = [1, 1]} : vector<16x32xf32> to vector<2x32xf32>
    %152 = arith.mulf %151, %148 : vector<2x32xf32>
    %153 = vector.extract_strided_slice %124 {offsets = [4, 0], sizes = [2, 32], strides = [1, 1]} : vector<16x32xf32> to vector<2x32xf32>
    %cst_32 = arith.constant 1.000000e+00 : f32
    %154 = vector.broadcast %cst_32 : f32 to vector<2x32xf32>
    %155 = arith.subf %154, %153 : vector<2x32xf32>
    %156 = vector.extract_strided_slice %118 {offsets = [4, 0], sizes = [2, 32], strides = [1, 1]} : vector<16x32xf32> to vector<2x32xf32>
    %157 = arith.mulf %155, %156 : vector<2x32xf32>
    %158 = arith.addf %152, %157 : vector<2x32xf32>
    %159 = vector.extract_strided_slice %130 {offsets = [4, 0], sizes = [2, 32], strides = [1, 1]} : vector<16x32xf32> to vector<2x32xf32>
    %160 = arith.mulf %159, %158 : vector<2x32xf32>
    %161 = vector.extract_strided_slice %124 {offsets = [6, 0], sizes = [2, 32], strides = [1, 1]} : vector<16x32xf32> to vector<2x32xf32>
    %162 = arith.mulf %161, %158 : vector<2x32xf32>
    %163 = vector.extract_strided_slice %124 {offsets = [6, 0], sizes = [2, 32], strides = [1, 1]} : vector<16x32xf32> to vector<2x32xf32>
    %cst_33 = arith.constant 1.000000e+00 : f32
    %164 = vector.broadcast %cst_33 : f32 to vector<2x32xf32>
    %165 = arith.subf %164, %163 : vector<2x32xf32>
    %166 = vector.extract_strided_slice %118 {offsets = [6, 0], sizes = [2, 32], strides = [1, 1]} : vector<16x32xf32> to vector<2x32xf32>
    %167 = arith.mulf %165, %166 : vector<2x32xf32>
    %168 = arith.addf %162, %167 : vector<2x32xf32>
    %169 = vector.extract_strided_slice %130 {offsets = [6, 0], sizes = [2, 32], strides = [1, 1]} : vector<16x32xf32> to vector<2x32xf32>
    %170 = arith.mulf %169, %168 : vector<2x32xf32>
    %171 = vector.extract_strided_slice %124 {offsets = [8, 0], sizes = [2, 32], strides = [1, 1]} : vector<16x32xf32> to vector<2x32xf32>
    %172 = arith.mulf %171, %168 : vector<2x32xf32>
    %173 = vector.extract_strided_slice %124 {offsets = [8, 0], sizes = [2, 32], strides = [1, 1]} : vector<16x32xf32> to vector<2x32xf32>
    %cst_34 = arith.constant 1.000000e+00 : f32
    %174 = vector.broadcast %cst_34 : f32 to vector<2x32xf32>
    %175 = arith.subf %174, %173 : vector<2x32xf32>
    %176 = vector.extract_strided_slice %118 {offsets = [8, 0], sizes = [2, 32], strides = [1, 1]} : vector<16x32xf32> to vector<2x32xf32>
    %177 = arith.mulf %175, %176 : vector<2x32xf32>
    %178 = arith.addf %172, %177 : vector<2x32xf32>
    %179 = vector.extract_strided_slice %130 {offsets = [8, 0], sizes = [2, 32], strides = [1, 1]} : vector<16x32xf32> to vector<2x32xf32>
    %180 = arith.mulf %179, %178 : vector<2x32xf32>
    %181 = vector.extract_strided_slice %124 {offsets = [10, 0], sizes = [2, 32], strides = [1, 1]} : vector<16x32xf32> to vector<2x32xf32>
    %182 = arith.mulf %181, %178 : vector<2x32xf32>
    %183 = vector.extract_strided_slice %124 {offsets = [10, 0], sizes = [2, 32], strides = [1, 1]} : vector<16x32xf32> to vector<2x32xf32>
    %cst_35 = arith.constant 1.000000e+00 : f32
    %184 = vector.broadcast %cst_35 : f32 to vector<2x32xf32>
    %185 = arith.subf %184, %183 : vector<2x32xf32>
    %186 = vector.extract_strided_slice %118 {offsets = [10, 0], sizes = [2, 32], strides = [1, 1]} : vector<16x32xf32> to vector<2x32xf32>
    %187 = arith.mulf %185, %186 : vector<2x32xf32>
    %188 = arith.addf %182, %187 : vector<2x32xf32>
    %189 = vector.extract_strided_slice %130 {offsets = [10, 0], sizes = [2, 32], strides = [1, 1]} : vector<16x32xf32> to vector<2x32xf32>
    %190 = arith.mulf %189, %188 : vector<2x32xf32>
    %191 = vector.extract_strided_slice %124 {offsets = [12, 0], sizes = [2, 32], strides = [1, 1]} : vector<16x32xf32> to vector<2x32xf32>
    %192 = arith.mulf %191, %188 : vector<2x32xf32>
    %193 = vector.extract_strided_slice %124 {offsets = [12, 0], sizes = [2, 32], strides = [1, 1]} : vector<16x32xf32> to vector<2x32xf32>
    %cst_36 = arith.constant 1.000000e+00 : f32
    %194 = vector.broadcast %cst_36 : f32 to vector<2x32xf32>
    %195 = arith.subf %194, %193 : vector<2x32xf32>
    %196 = vector.extract_strided_slice %118 {offsets = [12, 0], sizes = [2, 32], strides = [1, 1]} : vector<16x32xf32> to vector<2x32xf32>
    %197 = arith.mulf %195, %196 : vector<2x32xf32>
    %198 = arith.addf %192, %197 : vector<2x32xf32>
    %199 = vector.extract_strided_slice %130 {offsets = [12, 0], sizes = [2, 32], strides = [1, 1]} : vector<16x32xf32> to vector<2x32xf32>
    %200 = arith.mulf %199, %198 : vector<2x32xf32>
    %201 = vector.extract_strided_slice %124 {offsets = [14, 0], sizes = [2, 32], strides = [1, 1]} : vector<16x32xf32> to vector<2x32xf32>
    %202 = arith.mulf %201, %198 : vector<2x32xf32>
    %203 = vector.extract_strided_slice %124 {offsets = [14, 0], sizes = [2, 32], strides = [1, 1]} : vector<16x32xf32> to vector<2x32xf32>
    %cst_37 = arith.constant 1.000000e+00 : f32
    %204 = vector.broadcast %cst_37 : f32 to vector<2x32xf32>
    %205 = arith.subf %204, %203 : vector<2x32xf32>
    %206 = vector.extract_strided_slice %118 {offsets = [14, 0], sizes = [2, 32], strides = [1, 1]} : vector<16x32xf32> to vector<2x32xf32>
    %207 = arith.mulf %205, %206 : vector<2x32xf32>
    %208 = arith.addf %202, %207 : vector<2x32xf32>
    %209 = vector.extract_strided_slice %130 {offsets = [14, 0], sizes = [2, 32], strides = [1, 1]} : vector<16x32xf32> to vector<2x32xf32>
    %210 = arith.mulf %209, %208 : vector<2x32xf32>
    %211 = tpu.concatenate %140, %150, %160, %170, %180, %190, %200, %210 in 0 : vector<2x32xf32>, vector<2x32xf32>, vector<2x32xf32>, vector<2x32xf32>, vector<2x32xf32>, vector<2x32xf32>, vector<2x32xf32>, vector<2x32xf32> -> vector<16x32xf32>
    %212 = arith.truncf %211 : vector<16x32xf32> to vector<16x32xbf16>
    %213 = tpu.concatenate %101, %140, %150, %160, %170, %180, %190, %200 in 0 : vector<2x32xf32>, vector<2x32xf32>, vector<2x32xf32>, vector<2x32xf32>, vector<2x32xf32>, vector<2x32xf32>, vector<2x32xf32>, vector<2x32xf32> -> vector<16x32xf32>
    %214 = arith.truncf %213 : vector<16x32xf32> to vector<16x32xbf16>
    %c1 = arith.constant 1 : index
    %c0_38 = arith.constant 0 : index
    %c0_39 = arith.constant 0 : index
    %215 = vector.load %arg3[%c1, %c0_38, %c0_39] : memref<3x32x96xbf16, #tpu.memory_space<vmem>>, vector<1x32x96xbf16>
    %216 = vector.shape_cast %215 : vector<1x32x96xbf16> to vector<32x96xbf16>
    %cst_40 = arith.constant dense<0.000000e+00> : vector<16x96xf32>
    %217 = tpu.matmul %214, %216, %cst_40 {dimension_numbers = #tpu.dot_dimension_numbers<[1], [0], [0], [1], [0, 0, 1, 1], [], []>} : vector<16x32xbf16>, vector<32x96xbf16>, vector<16x96xf32> -> vector<16x96xf32>
    %c1_41 = arith.constant 1 : index
    %c0_42 = arith.constant 0 : index
    %c0_43 = arith.constant 0 : index
    %218 = vector.load %arg4[%c1_41, %c0_42, %c0_43] : memref<3x32x96xbf16, #tpu.memory_space<vmem>>, vector<1x32x96xbf16>
    %219 = vector.shape_cast %218 : vector<1x32x96xbf16> to vector<32x96xbf16>
    %cst_44 = arith.constant dense<0.000000e+00> : vector<16x96xf32>
    %220 = tpu.matmul %212, %219, %cst_44 {dimension_numbers = #tpu.dot_dimension_numbers<[1], [0], [0], [1], [0, 0, 1, 1], [], []>} : vector<16x32xbf16>, vector<32x96xbf16>, vector<16x96xf32> -> vector<16x96xf32>
    %221 = arith.addf %217, %220 : vector<16x96xf32>
    %c1_45 = arith.constant 1 : index
    %c0_46 = arith.constant 0 : index
    %c0_47 = arith.constant 0 : index
    %222 = vector.load %arg5[%c1_45, %c0_46, %c0_47] : memref<3x1x96xf32, #tpu.memory_space<vmem>>, vector<1x1x96xf32>
    %223 = vector.shape_cast %222 : vector<1x1x96xf32> to vector<1x96xf32>
    %224 = vector.broadcast %223 : vector<1x96xf32> to vector<16x96xf32>
    %225 = arith.addf %221, %224 : vector<16x96xf32>
    %226 = vector.extract_strided_slice %225 {offsets = [0, 0], sizes = [16, 32], strides = [1, 1]} : vector<16x96xf32> to vector<16x32xf32>
    %227 = math.tanh %226 : vector<16x32xf32>
    %228 = vector.extract_strided_slice %225 {offsets = [0, 32], sizes = [16, 32], strides = [1, 1]} : vector<16x96xf32> to vector<16x32xf32>
    %229 = arith.negf %228 : vector<16x32xf32>
    %230 = math.exp %229 : vector<16x32xf32>
    %cst_48 = arith.constant 1.000000e+00 : f32
    %231 = vector.broadcast %cst_48 : f32 to vector<16x32xf32>
    %232 = arith.addf %231, %230 : vector<16x32xf32>
    %233 = arith.divf %231, %232 : vector<16x32xf32>
    %234 = vector.extract_strided_slice %225 {offsets = [0, 64], sizes = [16, 32], strides = [1, 1]} : vector<16x96xf32> to vector<16x32xf32>
    %235 = arith.negf %234 : vector<16x32xf32>
    %236 = math.exp %235 : vector<16x32xf32>
    %cst_49 = arith.constant 1.000000e+00 : f32
    %237 = vector.broadcast %cst_49 : f32 to vector<16x32xf32>
    %238 = arith.addf %237, %236 : vector<16x32xf32>
    %239 = arith.divf %237, %238 : vector<16x32xf32>
    %240 = vector.extract_strided_slice %233 {offsets = [0, 0], sizes = [2, 32], strides = [1, 1]} : vector<16x32xf32> to vector<2x32xf32>
    %241 = arith.mulf %240, %208 : vector<2x32xf32>
    %242 = vector.extract_strided_slice %233 {offsets = [0, 0], sizes = [2, 32], strides = [1, 1]} : vector<16x32xf32> to vector<2x32xf32>
    %cst_50 = arith.constant 1.000000e+00 : f32
    %243 = vector.broadcast %cst_50 : f32 to vector<2x32xf32>
    %244 = arith.subf %243, %242 : vector<2x32xf32>
    %245 = vector.extract_strided_slice %227 {offsets = [0, 0], sizes = [2, 32], strides = [1, 1]} : vector<16x32xf32> to vector<2x32xf32>
    %246 = arith.mulf %244, %245 : vector<2x32xf32>
    %247 = arith.addf %241, %246 : vector<2x32xf32>
    %248 = vector.extract_strided_slice %239 {offsets = [0, 0], sizes = [2, 32], strides = [1, 1]} : vector<16x32xf32> to vector<2x32xf32>
    %249 = arith.mulf %248, %247 : vector<2x32xf32>
    %250 = vector.extract_strided_slice %233 {offsets = [2, 0], sizes = [2, 32], strides = [1, 1]} : vector<16x32xf32> to vector<2x32xf32>
    %251 = arith.mulf %250, %247 : vector<2x32xf32>
    %252 = vector.extract_strided_slice %233 {offsets = [2, 0], sizes = [2, 32], strides = [1, 1]} : vector<16x32xf32> to vector<2x32xf32>
    %cst_51 = arith.constant 1.000000e+00 : f32
    %253 = vector.broadcast %cst_51 : f32 to vector<2x32xf32>
    %254 = arith.subf %253, %252 : vector<2x32xf32>
    %255 = vector.extract_strided_slice %227 {offsets = [2, 0], sizes = [2, 32], strides = [1, 1]} : vector<16x32xf32> to vector<2x32xf32>
    %256 = arith.mulf %254, %255 : vector<2x32xf32>
    %257 = arith.addf %251, %256 : vector<2x32xf32>
    %258 = vector.extract_strided_slice %239 {offsets = [2, 0], sizes = [2, 32], strides = [1, 1]} : vector<16x32xf32> to vector<2x32xf32>
    %259 = arith.mulf %258, %257 : vector<2x32xf32>
    %260 = vector.extract_strided_slice %233 {offsets = [4, 0], sizes = [2, 32], strides = [1, 1]} : vector<16x32xf32> to vector<2x32xf32>
    %261 = arith.mulf %260, %257 : vector<2x32xf32>
    %262 = vector.extract_strided_slice %233 {offsets = [4, 0], sizes = [2, 32], strides = [1, 1]} : vector<16x32xf32> to vector<2x32xf32>
    %cst_52 = arith.constant 1.000000e+00 : f32
    %263 = vector.broadcast %cst_52 : f32 to vector<2x32xf32>
    %264 = arith.subf %263, %262 : vector<2x32xf32>
    %265 = vector.extract_strided_slice %227 {offsets = [4, 0], sizes = [2, 32], strides = [1, 1]} : vector<16x32xf32> to vector<2x32xf32>
    %266 = arith.mulf %264, %265 : vector<2x32xf32>
    %267 = arith.addf %261, %266 : vector<2x32xf32>
    %268 = vector.extract_strided_slice %239 {offsets = [4, 0], sizes = [2, 32], strides = [1, 1]} : vector<16x32xf32> to vector<2x32xf32>
    %269 = arith.mulf %268, %267 : vector<2x32xf32>
    %270 = vector.extract_strided_slice %233 {offsets = [6, 0], sizes = [2, 32], strides = [1, 1]} : vector<16x32xf32> to vector<2x32xf32>
    %271 = arith.mulf %270, %267 : vector<2x32xf32>
    %272 = vector.extract_strided_slice %233 {offsets = [6, 0], sizes = [2, 32], strides = [1, 1]} : vector<16x32xf32> to vector<2x32xf32>
    %cst_53 = arith.constant 1.000000e+00 : f32
    %273 = vector.broadcast %cst_53 : f32 to vector<2x32xf32>
    %274 = arith.subf %273, %272 : vector<2x32xf32>
    %275 = vector.extract_strided_slice %227 {offsets = [6, 0], sizes = [2, 32], strides = [1, 1]} : vector<16x32xf32> to vector<2x32xf32>
    %276 = arith.mulf %274, %275 : vector<2x32xf32>
    %277 = arith.addf %271, %276 : vector<2x32xf32>
    %278 = vector.extract_strided_slice %239 {offsets = [6, 0], sizes = [2, 32], strides = [1, 1]} : vector<16x32xf32> to vector<2x32xf32>
    %279 = arith.mulf %278, %277 : vector<2x32xf32>
    %280 = vector.extract_strided_slice %233 {offsets = [8, 0], sizes = [2, 32], strides = [1, 1]} : vector<16x32xf32> to vector<2x32xf32>
    %281 = arith.mulf %280, %277 : vector<2x32xf32>
    %282 = vector.extract_strided_slice %233 {offsets = [8, 0], sizes = [2, 32], strides = [1, 1]} : vector<16x32xf32> to vector<2x32xf32>
    %cst_54 = arith.constant 1.000000e+00 : f32
    %283 = vector.broadcast %cst_54 : f32 to vector<2x32xf32>
    %284 = arith.subf %283, %282 : vector<2x32xf32>
    %285 = vector.extract_strided_slice %227 {offsets = [8, 0], sizes = [2, 32], strides = [1, 1]} : vector<16x32xf32> to vector<2x32xf32>
    %286 = arith.mulf %284, %285 : vector<2x32xf32>
    %287 = arith.addf %281, %286 : vector<2x32xf32>
    %288 = vector.extract_strided_slice %239 {offsets = [8, 0], sizes = [2, 32], strides = [1, 1]} : vector<16x32xf32> to vector<2x32xf32>
    %289 = arith.mulf %288, %287 : vector<2x32xf32>
    %290 = vector.extract_strided_slice %233 {offsets = [10, 0], sizes = [2, 32], strides = [1, 1]} : vector<16x32xf32> to vector<2x32xf32>
    %291 = arith.mulf %290, %287 : vector<2x32xf32>
    %292 = vector.extract_strided_slice %233 {offsets = [10, 0], sizes = [2, 32], strides = [1, 1]} : vector<16x32xf32> to vector<2x32xf32>
    %cst_55 = arith.constant 1.000000e+00 : f32
    %293 = vector.broadcast %cst_55 : f32 to vector<2x32xf32>
    %294 = arith.subf %293, %292 : vector<2x32xf32>
    %295 = vector.extract_strided_slice %227 {offsets = [10, 0], sizes = [2, 32], strides = [1, 1]} : vector<16x32xf32> to vector<2x32xf32>
    %296 = arith.mulf %294, %295 : vector<2x32xf32>
    %297 = arith.addf %291, %296 : vector<2x32xf32>
    %298 = vector.extract_strided_slice %239 {offsets = [10, 0], sizes = [2, 32], strides = [1, 1]} : vector<16x32xf32> to vector<2x32xf32>
    %299 = arith.mulf %298, %297 : vector<2x32xf32>
    %300 = vector.extract_strided_slice %233 {offsets = [12, 0], sizes = [2, 32], strides = [1, 1]} : vector<16x32xf32> to vector<2x32xf32>
    %301 = arith.mulf %300, %297 : vector<2x32xf32>
    %302 = vector.extract_strided_slice %233 {offsets = [12, 0], sizes = [2, 32], strides = [1, 1]} : vector<16x32xf32> to vector<2x32xf32>
    %cst_56 = arith.constant 1.000000e+00 : f32
    %303 = vector.broadcast %cst_56 : f32 to vector<2x32xf32>
    %304 = arith.subf %303, %302 : vector<2x32xf32>
    %305 = vector.extract_strided_slice %227 {offsets = [12, 0], sizes = [2, 32], strides = [1, 1]} : vector<16x32xf32> to vector<2x32xf32>
    %306 = arith.mulf %304, %305 : vector<2x32xf32>
    %307 = arith.addf %301, %306 : vector<2x32xf32>
    %308 = vector.extract_strided_slice %239 {offsets = [12, 0], sizes = [2, 32], strides = [1, 1]} : vector<16x32xf32> to vector<2x32xf32>
    %309 = arith.mulf %308, %307 : vector<2x32xf32>
    %310 = vector.extract_strided_slice %233 {offsets = [14, 0], sizes = [2, 32], strides = [1, 1]} : vector<16x32xf32> to vector<2x32xf32>
    %311 = arith.mulf %310, %307 : vector<2x32xf32>
    %312 = vector.extract_strided_slice %233 {offsets = [14, 0], sizes = [2, 32], strides = [1, 1]} : vector<16x32xf32> to vector<2x32xf32>
    %cst_57 = arith.constant 1.000000e+00 : f32
    %313 = vector.broadcast %cst_57 : f32 to vector<2x32xf32>
    %314 = arith.subf %313, %312 : vector<2x32xf32>
    %315 = vector.extract_strided_slice %227 {offsets = [14, 0], sizes = [2, 32], strides = [1, 1]} : vector<16x32xf32> to vector<2x32xf32>
    %316 = arith.mulf %314, %315 : vector<2x32xf32>
    %317 = arith.addf %311, %316 : vector<2x32xf32>
    %318 = vector.extract_strided_slice %239 {offsets = [14, 0], sizes = [2, 32], strides = [1, 1]} : vector<16x32xf32> to vector<2x32xf32>
    %319 = arith.mulf %318, %317 : vector<2x32xf32>
    %320 = tpu.concatenate %249, %259, %269, %279, %289, %299, %309, %319 in 0 : vector<2x32xf32>, vector<2x32xf32>, vector<2x32xf32>, vector<2x32xf32>, vector<2x32xf32>, vector<2x32xf32>, vector<2x32xf32>, vector<2x32xf32> -> vector<16x32xf32>
    %321 = arith.truncf %320 : vector<16x32xf32> to vector<16x32xbf16>
    %322 = tpu.concatenate %101, %249, %259, %269, %279, %289, %299, %309 in 0 : vector<2x32xf32>, vector<2x32xf32>, vector<2x32xf32>, vector<2x32xf32>, vector<2x32xf32>, vector<2x32xf32>, vector<2x32xf32>, vector<2x32xf32> -> vector<16x32xf32>
    %323 = arith.truncf %322 : vector<16x32xf32> to vector<16x32xbf16>
    %c2 = arith.constant 2 : index
    %c0_58 = arith.constant 0 : index
    %c0_59 = arith.constant 0 : index
    %324 = vector.load %arg3[%c2, %c0_58, %c0_59] : memref<3x32x96xbf16, #tpu.memory_space<vmem>>, vector<1x32x96xbf16>
    %325 = vector.shape_cast %324 : vector<1x32x96xbf16> to vector<32x96xbf16>
    %cst_60 = arith.constant dense<0.000000e+00> : vector<16x96xf32>
    %326 = tpu.matmul %323, %325, %cst_60 {dimension_numbers = #tpu.dot_dimension_numbers<[1], [0], [0], [1], [0, 0, 1, 1], [], []>} : vector<16x32xbf16>, vector<32x96xbf16>, vector<16x96xf32> -> vector<16x96xf32>
    %c2_61 = arith.constant 2 : index
    %c0_62 = arith.constant 0 : index
    %c0_63 = arith.constant 0 : index
    %327 = vector.load %arg4[%c2_61, %c0_62, %c0_63] : memref<3x32x96xbf16, #tpu.memory_space<vmem>>, vector<1x32x96xbf16>
    %328 = vector.shape_cast %327 : vector<1x32x96xbf16> to vector<32x96xbf16>
    %cst_64 = arith.constant dense<0.000000e+00> : vector<16x96xf32>
    %329 = tpu.matmul %321, %328, %cst_64 {dimension_numbers = #tpu.dot_dimension_numbers<[1], [0], [0], [1], [0, 0, 1, 1], [], []>} : vector<16x32xbf16>, vector<32x96xbf16>, vector<16x96xf32> -> vector<16x96xf32>
    %330 = arith.addf %326, %329 : vector<16x96xf32>
    %c2_65 = arith.constant 2 : index
    %c0_66 = arith.constant 0 : index
    %c0_67 = arith.constant 0 : index
    %331 = vector.load %arg5[%c2_65, %c0_66, %c0_67] : memref<3x1x96xf32, #tpu.memory_space<vmem>>, vector<1x1x96xf32>
    %332 = vector.shape_cast %331 : vector<1x1x96xf32> to vector<1x96xf32>
    %333 = vector.broadcast %332 : vector<1x96xf32> to vector<16x96xf32>
    %334 = arith.addf %330, %333 : vector<16x96xf32>
    %335 = vector.extract_strided_slice %334 {offsets = [0, 0], sizes = [16, 32], strides = [1, 1]} : vector<16x96xf32> to vector<16x32xf32>
    %336 = math.tanh %335 : vector<16x32xf32>
    %337 = vector.extract_strided_slice %334 {offsets = [0, 32], sizes = [16, 32], strides = [1, 1]} : vector<16x96xf32> to vector<16x32xf32>
    %338 = arith.negf %337 : vector<16x32xf32>
    %339 = math.exp %338 : vector<16x32xf32>
    %cst_68 = arith.constant 1.000000e+00 : f32
    %340 = vector.broadcast %cst_68 : f32 to vector<16x32xf32>
    %341 = arith.addf %340, %339 : vector<16x32xf32>
    %342 = arith.divf %340, %341 : vector<16x32xf32>
    %343 = vector.extract_strided_slice %334 {offsets = [0, 64], sizes = [16, 32], strides = [1, 1]} : vector<16x96xf32> to vector<16x32xf32>
    %344 = arith.negf %343 : vector<16x32xf32>
    %345 = math.exp %344 : vector<16x32xf32>
    %cst_69 = arith.constant 1.000000e+00 : f32
    %346 = vector.broadcast %cst_69 : f32 to vector<16x32xf32>
    %347 = arith.addf %346, %345 : vector<16x32xf32>
    %348 = arith.divf %346, %347 : vector<16x32xf32>
    %349 = vector.extract_strided_slice %342 {offsets = [0, 0], sizes = [2, 32], strides = [1, 1]} : vector<16x32xf32> to vector<2x32xf32>
    %350 = arith.mulf %349, %317 : vector<2x32xf32>
    %351 = vector.extract_strided_slice %342 {offsets = [0, 0], sizes = [2, 32], strides = [1, 1]} : vector<16x32xf32> to vector<2x32xf32>
    %cst_70 = arith.constant 1.000000e+00 : f32
    %352 = vector.broadcast %cst_70 : f32 to vector<2x32xf32>
    %353 = arith.subf %352, %351 : vector<2x32xf32>
    %354 = vector.extract_strided_slice %336 {offsets = [0, 0], sizes = [2, 32], strides = [1, 1]} : vector<16x32xf32> to vector<2x32xf32>
    %355 = arith.mulf %353, %354 : vector<2x32xf32>
    %356 = arith.addf %350, %355 : vector<2x32xf32>
    %357 = vector.extract_strided_slice %342 {offsets = [2, 0], sizes = [2, 32], strides = [1, 1]} : vector<16x32xf32> to vector<2x32xf32>
    %358 = arith.mulf %357, %356 : vector<2x32xf32>
    %359 = vector.extract_strided_slice %342 {offsets = [2, 0], sizes = [2, 32], strides = [1, 1]} : vector<16x32xf32> to vector<2x32xf32>
    %cst_71 = arith.constant 1.000000e+00 : f32
    %360 = vector.broadcast %cst_71 : f32 to vector<2x32xf32>
    %361 = arith.subf %360, %359 : vector<2x32xf32>
    %362 = vector.extract_strided_slice %336 {offsets = [2, 0], sizes = [2, 32], strides = [1, 1]} : vector<16x32xf32> to vector<2x32xf32>
    %363 = arith.mulf %361, %362 : vector<2x32xf32>
    %364 = arith.addf %358, %363 : vector<2x32xf32>
    %365 = vector.extract_strided_slice %342 {offsets = [4, 0], sizes = [2, 32], strides = [1, 1]} : vector<16x32xf32> to vector<2x32xf32>
    %366 = arith.mulf %365, %364 : vector<2x32xf32>
    %367 = vector.extract_strided_slice %342 {offsets = [4, 0], sizes = [2, 32], strides = [1, 1]} : vector<16x32xf32> to vector<2x32xf32>
    %cst_72 = arith.constant 1.000000e+00 : f32
    %368 = vector.broadcast %cst_72 : f32 to vector<2x32xf32>
    %369 = arith.subf %368, %367 : vector<2x32xf32>
    %370 = vector.extract_strided_slice %336 {offsets = [4, 0], sizes = [2, 32], strides = [1, 1]} : vector<16x32xf32> to vector<2x32xf32>
    %371 = arith.mulf %369, %370 : vector<2x32xf32>
    %372 = arith.addf %366, %371 : vector<2x32xf32>
    %373 = vector.extract_strided_slice %342 {offsets = [6, 0], sizes = [2, 32], strides = [1, 1]} : vector<16x32xf32> to vector<2x32xf32>
    %374 = arith.mulf %373, %372 : vector<2x32xf32>
    %375 = vector.extract_strided_slice %342 {offsets = [6, 0], sizes = [2, 32], strides = [1, 1]} : vector<16x32xf32> to vector<2x32xf32>
    %cst_73 = arith.constant 1.000000e+00 : f32
    %376 = vector.broadcast %cst_73 : f32 to vector<2x32xf32>
    %377 = arith.subf %376, %375 : vector<2x32xf32>
    %378 = vector.extract_strided_slice %336 {offsets = [6, 0], sizes = [2, 32], strides = [1, 1]} : vector<16x32xf32> to vector<2x32xf32>
    %379 = arith.mulf %377, %378 : vector<2x32xf32>
    %380 = arith.addf %374, %379 : vector<2x32xf32>
    %381 = vector.extract_strided_slice %342 {offsets = [8, 0], sizes = [2, 32], strides = [1, 1]} : vector<16x32xf32> to vector<2x32xf32>
    %382 = arith.mulf %381, %380 : vector<2x32xf32>
    %383 = vector.extract_strided_slice %342 {offsets = [8, 0], sizes = [2, 32], strides = [1, 1]} : vector<16x32xf32> to vector<2x32xf32>
    %cst_74 = arith.constant 1.000000e+00 : f32
    %384 = vector.broadcast %cst_74 : f32 to vector<2x32xf32>
    %385 = arith.subf %384, %383 : vector<2x32xf32>
    %386 = vector.extract_strided_slice %336 {offsets = [8, 0], sizes = [2, 32], strides = [1, 1]} : vector<16x32xf32> to vector<2x32xf32>
    %387 = arith.mulf %385, %386 : vector<2x32xf32>
    %388 = arith.addf %382, %387 : vector<2x32xf32>
    %389 = vector.extract_strided_slice %342 {offsets = [10, 0], sizes = [2, 32], strides = [1, 1]} : vector<16x32xf32> to vector<2x32xf32>
    %390 = arith.mulf %389, %388 : vector<2x32xf32>
    %391 = vector.extract_strided_slice %342 {offsets = [10, 0], sizes = [2, 32], strides = [1, 1]} : vector<16x32xf32> to vector<2x32xf32>
    %cst_75 = arith.constant 1.000000e+00 : f32
    %392 = vector.broadcast %cst_75 : f32 to vector<2x32xf32>
    %393 = arith.subf %392, %391 : vector<2x32xf32>
    %394 = vector.extract_strided_slice %336 {offsets = [10, 0], sizes = [2, 32], strides = [1, 1]} : vector<16x32xf32> to vector<2x32xf32>
    %395 = arith.mulf %393, %394 : vector<2x32xf32>
    %396 = arith.addf %390, %395 : vector<2x32xf32>
    %397 = vector.extract_strided_slice %342 {offsets = [12, 0], sizes = [2, 32], strides = [1, 1]} : vector<16x32xf32> to vector<2x32xf32>
    %398 = arith.mulf %397, %396 : vector<2x32xf32>
    %399 = vector.extract_strided_slice %342 {offsets = [12, 0], sizes = [2, 32], strides = [1, 1]} : vector<16x32xf32> to vector<2x32xf32>
    %cst_76 = arith.constant 1.000000e+00 : f32
    %400 = vector.broadcast %cst_76 : f32 to vector<2x32xf32>
    %401 = arith.subf %400, %399 : vector<2x32xf32>
    %402 = vector.extract_strided_slice %336 {offsets = [12, 0], sizes = [2, 32], strides = [1, 1]} : vector<16x32xf32> to vector<2x32xf32>
    %403 = arith.mulf %401, %402 : vector<2x32xf32>
    %404 = arith.addf %398, %403 : vector<2x32xf32>
    %405 = vector.extract_strided_slice %342 {offsets = [14, 0], sizes = [2, 32], strides = [1, 1]} : vector<16x32xf32> to vector<2x32xf32>
    %406 = arith.mulf %405, %404 : vector<2x32xf32>
    %407 = vector.extract_strided_slice %342 {offsets = [14, 0], sizes = [2, 32], strides = [1, 1]} : vector<16x32xf32> to vector<2x32xf32>
    %cst_77 = arith.constant 1.000000e+00 : f32
    %408 = vector.broadcast %cst_77 : f32 to vector<2x32xf32>
    %409 = arith.subf %408, %407 : vector<2x32xf32>
    %410 = vector.extract_strided_slice %336 {offsets = [14, 0], sizes = [2, 32], strides = [1, 1]} : vector<16x32xf32> to vector<2x32xf32>
    %411 = arith.mulf %409, %410 : vector<2x32xf32>
    %412 = arith.addf %406, %411 : vector<2x32xf32>
    %413 = vector.extract_strided_slice %348 {offsets = [14, 0], sizes = [2, 32], strides = [1, 1]} : vector<16x32xf32> to vector<2x32xf32>
    %414 = arith.mulf %413, %412 : vector<2x32xf32>
    %415 = arith.truncf %414 : vector<2x32xf32> to vector<2x32xbf16>
    %c0_78 = arith.constant 0 : index
    %c0_79 = arith.constant 0 : index
    %416 = vector.load %arg6[%c0_78, %c0_79] : memref<32x10xbf16, #tpu.memory_space<vmem>>, vector<32x10xbf16>
    %cst_80 = arith.constant dense<0.000000e+00> : vector<2x10xf32>
    %417 = tpu.matmul %415, %416, %cst_80 {dimension_numbers = #tpu.dot_dimension_numbers<[1], [0], [0], [1], [0, 0, 1, 1], [], []>} : vector<2x32xbf16>, vector<32x10xbf16>, vector<2x10xf32> -> vector<2x10xf32>
    %c0_81 = arith.constant 0 : index
    %c0_82 = arith.constant 0 : index
    %418 = vector.load %arg7[%c0_81, %c0_82] : memref<1x10xf32, #tpu.memory_space<vmem>>, vector<1x10xf32>
    %419 = vector.broadcast %418 : vector<1x10xf32> to vector<2x10xf32>
    %420 = arith.addf %417, %419 : vector<2x10xf32>
    %c0_83 = arith.constant 0 : index
    %c0_84 = arith.constant 0 : index
    %421 = vector.load %arg8[%c0_83, %c0_84] : memref<2x10xf32, #tpu.memory_space<vmem>>, vector<2x10xf32>
    tpu.vector_store %arg8[%c0_83, %c0_84], %420 {strides = array<i32>} : memref<2x10xf32, #tpu.memory_space<vmem>>, vector<2x10xf32>,
    return
  }
}

</mosaic_0001>

<llo_original>
// kernel: tpu_custom_call.1
$region0: #{tpu_custom_call.1}
  #allocation0 [shape = 'u32[]', space=smem, size = 0x4, offset = 0x4, fixed_abs, tag = 'smem constant byte address 0x4 - core index']
  #allocation1 [shape = 'u32[72,128]{1,0:T(1,128)}', space=vmem, size = 0x9000, scoped, tag = 'internal scratch']
  %s0 = inlined_call_operand.vmem [shape: bf16[16,64], index: 0, kind: input, shape index: {}]
  %s1 = inlined_call_operand.hbm [shape: bf16[64,96], index: 1, kind: input, shape index: {}]
  %s2 = inlined_call_operand.vmem [shape: f32[1,96], index: 2, kind: input, shape index: {}]
  %s3 = inlined_call_operand.hbm [shape: bf16[3,32,96], index: 3, kind: input, shape index: {}]
  %s4 = inlined_call_operand.hbm [shape: bf16[3,32,96], index: 4, kind: input, shape index: {}]
  %s5 = inlined_call_operand.vmem [shape: f32[3,1,96], index: 5, kind: input, shape index: {}]
  %s6 = inlined_call_operand.vmem [shape: bf16[32,10], index: 6, kind: input, shape index: {}]
  %s7 = inlined_call_operand.vmem [shape: f32[1,10], index: 7, kind: input, shape index: {}]
  %s8 = inlined_call_operand.hbm [shape: f32[2,10], index: 8, kind: output, shape index: {}]
  %s9 = sld [smem:[#allocation0]]
  $region54: #{tpu_custom_call.1} parent=0
    _
  %s11 = ssub.s32 1, %s9
  %s12 = scalar_select 0, %s11, %s9
  $region1: #{tpu_custom_call.1} parent=0
    #allocation2 [shape = 'u8[16384]{0}', space=vmem, size = 0x4000, scoped, tag = 'input window, operand 1, single buffered']
    #allocation3 [shape = 's32[1]{0}', space=sflag, size = 0x4, scoped, tag = 'scoped memory for tpu_custom_call.1']
    #allocation4 [shape = 's32[1]{0}', space=sflag, size = 0x4, scoped, tag = 'scoped memory for tpu_custom_call.1']
    #allocation5 [shape = 'u8[24576]{0}', space=vmem, size = 0x6000, scoped, tag = 'input window, operand 3, single buffered']
    #allocation6 [shape = 's32[1]{0}', space=sflag, size = 0x4, scoped, tag = 'scoped memory for tpu_custom_call.1']
    #allocation7 [shape = 'u8[24576]{0}', space=vmem, size = 0x6000, scoped, tag = 'input window, operand 4, single buffered']
    #allocation8 [shape = 'u8[1024]{0}', space=vmem, size = 0x400, scoped, tag = 'output window, operand 0, single buffered']
    %13 = vsyncpa [#allocation3], 0
    %14 = vsyncpa [#allocation6], 0
    %15 = vsyncpa [#allocation4], 0
    // Predicated region
    $region2: #{tpu_custom_call.1} parent=1 // pred_check
      _
    $region3: #{tpu_custom_call.1} parent=1 // pred_check_branch
      %17 = sbr.rel (0) target = $region5
    $region4: #{tpu_custom_call.1} parent=1 // pred_region
      _
    $region5: #{tpu_custom_call.1} parent=1 // pred_fallthru
      _
    // Predicated region
    $region6: #{tpu_custom_call.1} parent=1 // pred_check
      _
    $region7: #{tpu_custom_call.1} parent=1 // pred_check_branch
      %19 = sbr.rel (0) target = $region9
    $region8: #{tpu_custom_call.1} parent=1 // pred_region
      %21 = vsyncadd [#allocation3], 0
      %s22 = sshll.u32 %s1, 4
      %s23 = int_to_ptr.hbm [resolvable:$true] %s22
      %s24 = sshll.u32 [#allocation2], 4
      %s25 = int_to_ptr.vmem [resolvable:$true] %s24
      %30 = dma.hbm_to_vmem [thread:$0]  %s23, 512, %s25, [#allocation3], 64, 64, 4
    $region9: #{tpu_custom_call.1} parent=1 // pred_fallthru
      _
    // Predicated region
    $region10: #{tpu_custom_call.1} parent=1 // pred_check
      _
    $region11: #{tpu_custom_call.1} parent=1 // pred_check_branch
      %32 = sbr.rel (0) target = $region13
    $region12: #{tpu_custom_call.1} parent=1 // pred_region
      _
    $region13: #{tpu_custom_call.1} parent=1 // pred_fallthru
      _
    // Predicated region
    $region14: #{tpu_custom_call.1} parent=1 // pred_check
      _
    $region15: #{tpu_custom_call.1} parent=1 // pred_check_branch
      %34 = sbr.rel (0) target = $region17
    $region16: #{tpu_custom_call.1} parent=1 // pred_region
      %36 = vsyncadd [#allocation6], 0
      %s37 = sshll.u32 %s3, 4
      %s38 = int_to_ptr.hbm [resolvable:$true] %s37
      %s39 = sshll.u32 [#allocation5], 4
      %s40 = int_to_ptr.vmem [resolvable:$true] %s39
      %45 = dma.hbm_to_vmem [thread:$0]  %s38, 768, %s40, [#allocation6], 64, 64, 4
    $region17: #{tpu_custom_call.1} parent=1 // pred_fallthru
      _
    // Predicated region
    $region18: #{tpu_custom_call.1} parent=1 // pred_check
      _
    $region19: #{tpu_custom_call.1} parent=1 // pred_check_branch
      %47 = sbr.rel (0) target = $region21
    $region20: #{tpu_custom_call.1} parent=1 // pred_region
      %49 = vsyncadd [#allocation6], 0
      %s50 = sshll.u32 %s4, 4
      %s51 = int_to_ptr.hbm [resolvable:$true] %s50
      %s52 = sshll.u32 [#allocation7], 4
      %s53 = int_to_ptr.vmem [resolvable:$true] %s52
      %58 = dma.hbm_to_vmem [thread:$0]  %s51, 768, %s53, [#allocation6], 64, 64, 4
    $region21: #{tpu_custom_call.1} parent=1 // pred_fallthru
      _
    // Predicated region
    $region22: #{tpu_custom_call.1} parent=1 // pred_check
      _
    $region23: #{tpu_custom_call.1} parent=1 // pred_check_branch
      %60 = sbr.rel (0) target = $region25
    $region24: #{tpu_custom_call.1} parent=1 // pred_region
      _
    $region25: #{tpu_custom_call.1} parent=1 // pred_fallthru
      _
    // Predicated region
    $region26: #{tpu_custom_call.1} parent=1 // pred_check
      _
    $region27: #{tpu_custom_call.1} parent=1 // pred_check_branch
      %62 = sbr.rel (0) target = $region29
    $region28: #{tpu_custom_call.1} parent=1 // pred_region
      _
    $region29: #{tpu_custom_call.1} parent=1 // pred_fallthru
      _
    // Predicated region
    $region30: #{tpu_custom_call.1} parent=1 // pred_check
      _
    $region31: #{tpu_custom_call.1} parent=1 // pred_check_branch
      %64 = sbr.rel (0) target = $region33
    $region32: #{tpu_custom_call.1} parent=1 // pred_region
      _
    $region33: #{tpu_custom_call.1} parent=1 // pred_fallthru
      _
    // Predicated region
    $region34: #{tpu_custom_call.1} parent=1 // pred_check
      _
    $region35: #{tpu_custom_call.1} parent=1 // pred_check_branch
      %66 = sbr.rel (0) target = $region37
    $region36: #{tpu_custom_call.1} parent=1 // pred_region
      %68 = dma.done [#allocation3], 512
    $region37: #{tpu_custom_call.1} parent=1 // pred_fallthru
      _
    // Predicated region
    $region38: #{tpu_custom_call.1} parent=1 // pred_check
      _
    $region39: #{tpu_custom_call.1} parent=1 // pred_check_branch
      %70 = sbr.rel (0) target = $region41
    $region40: #{tpu_custom_call.1} parent=1 // pred_region
      %72 = dma.done [#allocation6], 768
    $region41: #{tpu_custom_call.1} parent=1 // pred_fallthru
      _
    // Predicated region
    $region42: #{tpu_custom_call.1} parent=1 // pred_check
      _
    $region43: #{tpu_custom_call.1} parent=1 // pred_check_branch
      %74 = sbr.rel (0) target = $region45
    $region44: #{tpu_custom_call.1} parent=1 // pred_region
      %76 = dma.done [#allocation6], 768
    $region45: #{tpu_custom_call.1} parent=1 // pred_fallthru
      _
    %v78 = vld [vmem:[%s0] sm:$0xf]
    %v79 = vld [vmem:[%s0 + $0x4] sm:$0xf]
    %v80 = vld [vmem:[#allocation2] sm:$0xf]
    %v81 = vld [vmem:[#allocation2 + $0x4] sm:$0xf]
    %v82 = vld [vmem:[#allocation2 + $0x8] sm:$0xf]
    %v83 = vld [vmem:[#allocation2 + $0xc] sm:$0xf]
    %v84 = vld [vmem:[#allocation2 + $0x10] sm:$0xf]
    %v85 = vld [vmem:[#allocation2 + $0x14] sm:$0xf]
    %v86 = vld [vmem:[#allocation2 + $0x18] sm:$0xf]
    %v87 = vld [vmem:[#allocation2 + $0x1c] sm:$0xf]
    %v88 = vld [vmem:[%s2] sm:$0x1]
    %v90 = vperm.slane %v88, 0
    %v94 = vunpack.c.l.b16 %v78
    %v95 = vunpack.c.l.b16 %v79
    %v96 = vpack.c.b16 %v95, %v94
    %v105 = vunpack.c.l.b16 %v80
    %v106 = vunpack.c.l.b16 %v81
    %v107 = vunpack.c.l.b16 %v82
    %v108 = vunpack.c.l.b16 %v83
    %v109 = vunpack.c.l.b16 %v84
    %v110 = vunpack.c.l.b16 %v85
    %v111 = vunpack.c.l.b16 %v86
    %v112 = vunpack.c.l.b16 %v87
    %v113 = vpack.c.b16 %v106, %v105
    %v114 = vpack.c.b16 %v108, %v107
    %v115 = vpack.c.b16 %v110, %v109
    %v116 = vpack.c.b16 %v112, %v111
    %vm121 = vcmask 523264
    %v123 = vsel %vm121, %v96, 0
    %125 = vmatpush.bf16.msra.mxu0 0
    %126 = vmatpush.bf16.msra.mxu0 0
    %127 = vmatpush.bf16.msra.mxu0 0
    %128 = vmatpush.bf16.msra.mxu0 0
    %129 = vmatpush.bf16.msra.mxu0 %v116
    %130 = vmatpush.bf16.msra.mxu0 %v115
    %131 = vmatpush.bf16.msra.mxu0 %v114
    %132 = vmatpush.bf16.msra.mxu0 %v113
    %133 = vmatmul.bf16.gmra.mxu0 %v123
    %v134 = vpop.f32.mrf.mxu0
    %v135 = vadd.f32 %v90, %v134
    %v136 = vpop.f32.mrf.mxu0
    %v137 = vadd.f32 %v90, %v136
    %138 = vdwg.mxu0
    %v139 = vtanh.pop %v135
    %v140 = vtanh.pop %v137
    %v141 = vxor.u32 %v135, 2147483648
    %v142 = vxor.u32 %v137, 2147483648
    %v143 = vmul.f32 %v141, 1.442695
    %v144 = vpow.pop %v143
    %v145 = vmul.f32 %v142, 1.442695
    %v146 = vpow.pop %v145
    %v147 = vadd.f32 %v144, 1.0
    %v148 = vadd.f32 %v146, 1.0
    %v149 = vrcp.pop %v147
    %v150 = vmul.f32 %v147, %v149
    %v151 = vsub.f32 1.0, %v150
    %v152 = vmul.f32 %v149, %v151
    %v153 = vadd.f32 %v149, %v152
    %vm154 = vweird.f32 %v147
    %vm155 = vweird.f32 %v149
    %vm156 = vmor %vm154, %vm155
    %v157 = vsel %vm156, %v149, %v153
    %v158 = vand.u32 2147483647, %v147
    %vm159 = vcmp.eq.f32.partialorder %v158, 8.507059e+37
    %v160 = vand.u32 %v147, 2147483648
    %v161 = vor.u32 1.1754944e-38, %v160
    %v162 = vsel %vm159, %v161, %v157
    %v163 = vmul.f32 1.0, %v162
    %v164 = vrcp.pop %v148
    %v165 = vmul.f32 %v148, %v164
    %v166 = vsub.f32 1.0, %v165
    %v167 = vmul.f32 %v164, %v166
    %v168 = vadd.f32 %v164, %v167
    %vm169 = vweird.f32 %v148
    %vm170 = vweird.f32 %v164
    %vm171 = vmor %vm169, %vm170
    %v172 = vsel %vm171, %v164, %v168
    %v173 = vand.u32 2147483647, %v148
    %vm174 = vcmp.eq.f32.partialorder %v173, 8.507059e+37
    %v175 = vand.u32 %v148, 2147483648
    %v176 = vor.u32 1.1754944e-38, %v175
    %v177 = vsel %vm174, %v176, %v172
    %v178 = vmul.f32 1.0, %v177
    %v179 = vmul.f32 %v163, 0.0
    %v180 = vsub.f32 1.0, %v163
    %182 = vrot.lane.b32.xlu0 %v139, 32
    %v183 = vpop.permute.xlu0 %182
    %v185 = vmul.f32 %v180, %v183
    %v186 = vadd.f32 %v179, %v185
    %188 = vrot.lane.b32.xlu0 %v186, 32
    %v189 = vpop.permute.xlu0 %188
    %v191 = vmul.f32 %v163, %v189
    %v192 = vrot.slane %v186, 6
    %v194 = vmul.f32 %v163, %v192
    %v195 = vadd.f32 %v194, %v185
    %197 = vrot.lane.b32.xlu0 %v195, 32
    %v198 = vpop.permute.xlu0 %197
    %v200 = vmul.f32 %v163, %v198
    %v201 = vrot.slane %v195, 6
    %v203 = vmul.f32 %v163, %v201
    %v204 = vadd.f32 %v203, %v185
    %206 = vrot.lane.b32.xlu0 %v204, 32
    %v207 = vpop.permute.xlu0 %206
    %v209 = vmul.f32 %v163, %v207
    %v210 = vrot.slane %v204, 6
    %v212 = vmul.f32 %v163, %v210
    %v213 = vadd.f32 %v212, %v185
    %215 = vrot.lane.b32.xlu0 %v213, 32
    %v216 = vpop.permute.xlu0 %215
    %v218 = vmul.f32 %v163, %v216
    %v219 = vrot.slane %v213, 6
    %v221 = vmul.f32 %v178, %v219
    %v222 = vsub.f32 1.0, %v178
    %224 = vrot.lane.b32.xlu0 %v140, 32
    %v225 = vpop.permute.xlu0 %224
    %v227 = vmul.f32 %v222, %v225
    %v228 = vadd.f32 %v221, %v227
    %230 = vrot.lane.b32.xlu0 %v228, 32
    %v231 = vpop.permute.xlu0 %230
    %v233 = vmul.f32 %v178, %v231
    %v234 = vrot.slane %v228, 6
    %v236 = vmul.f32 %v178, %v234
    %v237 = vadd.f32 %v236, %v227
    %239 = vrot.lane.b32.xlu0 %v237, 32
    %v240 = vpop.permute.xlu0 %239
    %v242 = vmul.f32 %v178, %v240
    %v243 = vrot.slane %v237, 6
    %v245 = vmul.f32 %v178, %v243
    %v246 = vadd.f32 %v245, %v227
    %248 = vrot.lane.b32.xlu0 %v246, 32
    %v249 = vpop.permute.xlu0 %248
    %v251 = vmul.f32 %v178, %v249
    %v252 = vrot.slane %v246, 6
    %v254 = vmul.f32 %v178, %v252
    %v255 = vadd.f32 %v254, %v227
    %257 = vrot.lane.b32.xlu0 %v255, 32
    %v258 = vpop.permute.xlu0 %257
    %v260 = vmul.f32 %v178, %v258
    %vm261 = vcmask 1041408
    %v262 = vsel %vm261, %v191, %v200
    %vm263 = vcmask 1043456
    %v264 = vsel %vm263, %v262, %v209
    %vm265 = vcmask 1045504
    %v266 = vsel %vm265, %v264, %v218
    %v267 = vsel %vm261, %v233, %v242
    %v268 = vsel %vm263, %v267, %v251
    %v269 = vsel %vm265, %v268, %v260
    %v270 = vpack.c.bf16 %v269, %v266
    %v272 = vrot.slane %v191, 6
    %273 = vrot.lane.b32.xlu0 %v272, 64
    %v274 = vpop.permute.xlu0 %273
    %v277 = vrot.slane %v200, 6
    %278 = vrot.lane.b32.xlu0 %v277, 64
    %v279 = vpop.permute.xlu0 %278
    %v282 = vrot.slane %v209, 6
    %283 = vrot.lane.b32.xlu0 %v282, 64
    %v284 = vpop.permute.xlu0 %283
    %v287 = vrot.slane %v218, 6
    %288 = vrot.lane.b32.xlu0 %v287, 64
    %v289 = vpop.permute.xlu0 %288
    %v292 = vrot.slane %v233, 6
    %293 = vrot.lane.b32.xlu0 %v292, 64
    %v294 = vpop.permute.xlu0 %293
    %v297 = vrot.slane %v242, 6
    %298 = vrot.lane.b32.xlu0 %v297, 64
    %v299 = vpop.permute.xlu0 %298
    %v302 = vrot.slane %v251, 6
    %303 = vrot.lane.b32.xlu0 %v302, 64
    %v304 = vpop.permute.xlu0 %303
    %v306 = vsel %vm261, 0.0, %v274
    %v307 = vsel %vm263, %v306, %v279
    %v308 = vsel %vm265, %v307, %v284
    %v309 = vsel %vm261, %v289, %v294
    %v310 = vsel %vm263, %v309, %v299
    %v311 = vsel %vm265, %v310, %v304
    %v312 = vpack.c.bf16 %v311, %v308
    %v313 = vld [vmem:[#allocation5] sm:$0xf]
    %v314 = vld [vmem:[#allocation5 + $0x4] sm:$0xf]
    %v315 = vld [vmem:[#allocation5 + $0x8] sm:$0xf]
    %v316 = vld [vmem:[#allocation5 + $0xc] sm:$0xf]
    %v317 = vld [vmem:[#allocation7] sm:$0xf]
    %v318 = vld [vmem:[#allocation7 + $0x4] sm:$0xf]
    %v319 = vld [vmem:[#allocation7 + $0x8] sm:$0xf]
    %v320 = vld [vmem:[#allocation7 + $0xc] sm:$0xf]
    %322 = vrot.lane.b32.xlu0 %v270, 64
    %v323 = vpop.permute.xlu0 %322
    %v328 = vunpack.c.l.b16 %v317
    %v329 = vunpack.c.l.b16 %v318
    %v330 = vunpack.c.l.b16 %v319
    %v331 = vunpack.c.l.b16 %v320
    %v332 = vpack.c.b16 %v329, %v328
    %v333 = vpack.c.b16 %v331, %v330
    %vm336 = vcmask 261120
    %v338 = vsel %vm336, %v323, 0
    %340 = vmatpush.bf16.msra.mxu0 0
    %341 = vmatpush.bf16.msra.mxu0 0
    %342 = vmatpush.bf16.msra.mxu0 0
    %343 = vmatpush.bf16.msra.mxu0 0
    %344 = vmatpush.bf16.msra.mxu0 0
    %345 = vmatpush.bf16.msra.mxu0 0
    %346 = vmatpush.bf16.msra.mxu0 %v333
    %347 = vmatpush.bf16.msra.mxu0 %v332
    %348 = vmatmul.bf16.gmra.mxu0 %v338
    %v349 = vpop.f32.mrf.mxu0
    %v350 = vadd.f32 0.0, %v349
    %v351 = vpop.f32.mrf.mxu0
    %v352 = vadd.f32 0.0, %v351
    %353 = vdwg.mxu0
    %v358 = vunpack.c.l.b16 %v313
    %v359 = vunpack.c.l.b16 %v314
    %v360 = vunpack.c.l.b16 %v315
    %v361 = vunpack.c.l.b16 %v316
    %v362 = vpack.c.b16 %v359, %v358
    %v363 = vpack.c.b16 %v361, %v360
    %v367 = vsel %vm336, %v312, 0
    %369 = vmatpush.bf16.msra.mxu0 0
    %370 = vmatpush.bf16.msra.mxu0 0
    %371 = vmatpush.bf16.msra.mxu0 0
    %372 = vmatpush.bf16.msra.mxu0 0
    %373 = vmatpush.bf16.msra.mxu0 0
    %374 = vmatpush.bf16.msra.mxu0 0
    %375 = vmatpush.bf16.msra.mxu0 %v363
    %376 = vmatpush.bf16.msra.mxu0 %v362
    %377 = vmatmul.bf16.gmra.mxu0 %v367
    %v378 = vpop.f32.mrf.mxu0
    %v379 = vadd.f32 %v350, %v378
    %v380 = vpop.f32.mrf.mxu0
    %v381 = vadd.f32 %v352, %v380
    %382 = vdwg.mxu0
    %v383 = vld [vmem:[%s5] sm:$0x1]
    %v385 = vperm.slane %v383, 0
    %v387 = vadd.f32 %v379, %v385
    %v388 = vadd.f32 %v381, %v385
    %v389 = vtanh.pop %v387
    %v390 = vtanh.pop %v388
    %v391 = vxor.u32 %v387, 2147483648
    %v392 = vxor.u32 %v388, 2147483648
    %v393 = vmul.f32 %v391, 1.442695
    %v394 = vpow.pop %v393
    %v395 = vmul.f32 %v392, 1.442695
    %v396 = vpow.pop %v395
    %v397 = vadd.f32 %v394, 1.0
    %v398 = vadd.f32 %v396, 1.0
    %v399 = vrcp.pop %v397
    %v400 = vmul.f32 %v397, %v399
    %v401 = vsub.f32 1.0, %v400
    %v402 = vmul.f32 %v399, %v401
    %v403 = vadd.f32 %v399, %v402
    %vm404 = vweird.f32 %v397
    %vm405 = vweird.f32 %v399
    %vm406 = vmor %vm404, %vm405
    %v407 = vsel %vm406, %v399, %v403
    %v408 = vand.u32 2147483647, %v397
    %vm409 = vcmp.eq.f32.partialorder %v408, 8.507059e+37
    %v410 = vand.u32 %v397, 2147483648
    %v411 = vor.u32 1.1754944e-38, %v410
    %v412 = vsel %vm409, %v411, %v407
    %v413 = vmul.f32 1.0, %v412
    %v414 = vrcp.pop %v398
    %v415 = vmul.f32 %v398, %v414
    %v416 = vsub.f32 1.0, %v415
    %v417 = vmul.f32 %v414, %v416
    %v418 = vadd.f32 %v414, %v417
    %vm419 = vweird.f32 %v398
    %vm420 = vweird.f32 %v414
    %vm421 = vmor %vm419, %vm420
    %v422 = vsel %vm421, %v414, %v418
    %v423 = vand.u32 2147483647, %v398
    %vm424 = vcmp.eq.f32.partialorder %v423, 8.507059e+37
    %v425 = vand.u32 %v398, 2147483648
    %v426 = vor.u32 1.1754944e-38, %v425
    %v427 = vsel %vm424, %v426, %v422
    %v428 = vmul.f32 1.0, %v427
    %v429 = vrot.slane %v255, 6
    %v431 = vmul.f32 %v413, %v429
    %v432 = vsub.f32 1.0, %v413
    %434 = vrot.lane.b32.xlu0 %v389, 32
    %v435 = vpop.permute.xlu0 %434
    %v437 = vmul.f32 %v432, %v435
    %v438 = vadd.f32 %v431, %v437
    %440 = vrot.lane.b32.xlu0 %v438, 32
    %v441 = vpop.permute.xlu0 %440
    %v443 = vmul.f32 %v413, %v441
    %v444 = vrot.slane %v438, 6
    %v446 = vmul.f32 %v413, %v444
    %v447 = vadd.f32 %v446, %v437
    %449 = vrot.lane.b32.xlu0 %v447, 32
    %v450 = vpop.permute.xlu0 %449
    %v452 = vmul.f32 %v413, %v450
    %v453 = vrot.slane %v447, 6
    %v455 = vmul.f32 %v413, %v453
    %v456 = vadd.f32 %v455, %v437
    %458 = vrot.lane.b32.xlu0 %v456, 32
    %v459 = vpop.permute.xlu0 %458
    %v461 = vmul.f32 %v413, %v459
    %v462 = vrot.slane %v456, 6
    %v464 = vmul.f32 %v413, %v462
    %v465 = vadd.f32 %v464, %v437
    %467 = vrot.lane.b32.xlu0 %v465, 32
    %v468 = vpop.permute.xlu0 %467
    %v470 = vmul.f32 %v413, %v468
    %v471 = vrot.slane %v465, 6
    %v473 = vmul.f32 %v428, %v471
    %v474 = vsub.f32 1.0, %v428
    %476 = vrot.lane.b32.xlu0 %v390, 32
    %v477 = vpop.permute.xlu0 %476
    %v479 = vmul.f32 %v474, %v477
    %v480 = vadd.f32 %v473, %v479
    %482 = vrot.lane.b32.xlu0 %v480, 32
    %v483 = vpop.permute.xlu0 %482
    %v485 = vmul.f32 %v428, %v483
    %v486 = vrot.slane %v480, 6
    %v488 = vmul.f32 %v428, %v486
    %v489 = vadd.f32 %v488, %v479
    %491 = vrot.lane.b32.xlu0 %v489, 32
    %v492 = vpop.permute.xlu0 %491
    %v494 = vmul.f32 %v428, %v492
    %v495 = vrot.slane %v489, 6
    %v497 = vmul.f32 %v428, %v495
    %v498 = vadd.f32 %v497, %v479
    %500 = vrot.lane.b32.xlu0 %v498, 32
    %v501 = vpop.permute.xlu0 %500
    %v503 = vmul.f32 %v428, %v501
    %v504 = vrot.slane %v498, 6
    %v506 = vmul.f32 %v428, %v504
    %v507 = vadd.f32 %v506, %v479
    %509 = vrot.lane.b32.xlu0 %v507, 32
    %v510 = vpop.permute.xlu0 %509
    %v512 = vmul.f32 %v428, %v510
    %v513 = vsel %vm261, %v443, %v452
    %v514 = vsel %vm263, %v513, %v461
    %v515 = vsel %vm265, %v514, %v470
    %v516 = vsel %vm261, %v485, %v494
    %v517 = vsel %vm263, %v516, %v503
    %v518 = vsel %vm265, %v517, %v512
    %v519 = vpack.c.bf16 %v518, %v515
    %v521 = vrot.slane %v443, 6
    %522 = vrot.lane.b32.xlu0 %v521, 64
    %v523 = vpop.permute.xlu0 %522
    %v526 = vrot.slane %v452, 6
    %527 = vrot.lane.b32.xlu0 %v526, 64
    %v528 = vpop.permute.xlu0 %527
    %v531 = vrot.slane %v461, 6
    %532 = vrot.lane.b32.xlu0 %v531, 64
    %v533 = vpop.permute.xlu0 %532
    %v536 = vrot.slane %v470, 6
    %537 = vrot.lane.b32.xlu0 %v536, 64
    %v538 = vpop.permute.xlu0 %537
    %v541 = vrot.slane %v485, 6
    %542 = vrot.lane.b32.xlu0 %v541, 64
    %v543 = vpop.permute.xlu0 %542
    %v546 = vrot.slane %v494, 6
    %547 = vrot.lane.b32.xlu0 %v546, 64
    %v548 = vpop.permute.xlu0 %547
    %v551 = vrot.slane %v503, 6
    %552 = vrot.lane.b32.xlu0 %v551, 64
    %v553 = vpop.permute.xlu0 %552
    %v555 = vsel %vm261, 0.0, %v523
    %v556 = vsel %vm263, %v555, %v528
    %v557 = vsel %vm265, %v556, %v533
    %v558 = vsel %vm261, %v538, %v543
    %v559 = vsel %vm263, %v558, %v548
    %v560 = vsel %vm265, %v559, %v553
    %v561 = vpack.c.bf16 %v560, %v557
    %s562 = scalar_lea.vmem [#allocation5], 16
    %v563 = vld [vmem:[%s562] sm:$0xf]
    %v564 = vld [vmem:[%s562 + $0x4] sm:$0xf]
    %v565 = vld [vmem:[%s562 + $0x8] sm:$0xf]
    %v566 = vld [vmem:[%s562 + $0xc] sm:$0xf]
    %s567 = scalar_lea.vmem [#allocation7], 16
    %v568 = vld [vmem:[%s567] sm:$0xf]
    %v569 = vld [vmem:[%s567 + $0x4] sm:$0xf]
    %v570 = vld [vmem:[%s567 + $0x8] sm:$0xf]
    %v571 = vld [vmem:[%s567 + $0xc] sm:$0xf]
    %573 = vrot.lane.b32.xlu0 %v519, 64
    %v574 = vpop.permute.xlu0 %573
    %v579 = vunpack.c.l.b16 %v568
    %v580 = vunpack.c.l.b16 %v569
    %v581 = vunpack.c.l.b16 %v570
    %v582 = vunpack.c.l.b16 %v571
    %v583 = vpack.c.b16 %v580, %v579
    %v584 = vpack.c.b16 %v582, %v581
    %v588 = vsel %vm336, %v574, 0
    %590 = vmatpush.bf16.msra.mxu0 0
    %591 = vmatpush.bf16.msra.mxu0 0
    %592 = vmatpush.bf16.msra.mxu0 0
    %593 = vmatpush.bf16.msra.mxu0 0
    %594 = vmatpush.bf16.msra.mxu0 0
    %595 = vmatpush.bf16.msra.mxu0 0
    %596 = vmatpush.bf16.msra.mxu0 %v584
    %597 = vmatpush.bf16.msra.mxu0 %v583
    %598 = vmatmul.bf16.gmra.mxu0 %v588
    %v599 = vpop.f32.mrf.mxu0
    %v600 = vadd.f32 0.0, %v599
    %v601 = vpop.f32.mrf.mxu0
    %v602 = vadd.f32 0.0, %v601
    %603 = vdwg.mxu0
    %v608 = vunpack.c.l.b16 %v563
    %v609 = vunpack.c.l.b16 %v564
    %v610 = vunpack.c.l.b16 %v565
    %v611 = vunpack.c.l.b16 %v566
    %v612 = vpack.c.b16 %v609, %v608
    %v613 = vpack.c.b16 %v611, %v610
    %v617 = vsel %vm336, %v561, 0
    %619 = vmatpush.bf16.msra.mxu0 0
    %620 = vmatpush.bf16.msra.mxu0 0
    %621 = vmatpush.bf16.msra.mxu0 0
    %622 = vmatpush.bf16.msra.mxu0 0
    %623 = vmatpush.bf16.msra.mxu0 0
    %624 = vmatpush.bf16.msra.mxu0 0
    %625 = vmatpush.bf16.msra.mxu0 %v613
    %626 = vmatpush.bf16.msra.mxu0 %v612
    %627 = vmatmul.bf16.gmra.mxu0 %v617
    %v628 = vpop.f32.mrf.mxu0
    %v629 = vadd.f32 %v600, %v628
    %v630 = vpop.f32.mrf.mxu0
    %v631 = vadd.f32 %v602, %v630
    %632 = vdwg.mxu0
    %s633 = scalar_lea.vmem %s5, 1
    %v634 = vld [vmem:[%s633] sm:$0x1]
    %v636 = vperm.slane %v634, 0
    %v638 = vadd.f32 %v629, %v636
    %v639 = vadd.f32 %v631, %v636
    %v640 = vtanh.pop %v638
    %v641 = vtanh.pop %v639
    %v642 = vxor.u32 %v638, 2147483648
    %v643 = vxor.u32 %v639, 2147483648
    %v644 = vmul.f32 %v642, 1.442695
    %v645 = vpow.pop %v644
    %v646 = vmul.f32 %v643, 1.442695
    %v647 = vpow.pop %v646
    %v648 = vadd.f32 %v645, 1.0
    %v649 = vadd.f32 %v647, 1.0
    %v650 = vrcp.pop %v648
    %v651 = vmul.f32 %v648, %v650
    %v652 = vsub.f32 1.0, %v651
    %v653 = vmul.f32 %v650, %v652
    %v654 = vadd.f32 %v650, %v653
    %vm655 = vweird.f32 %v648
    %vm656 = vweird.f32 %v650
    %vm657 = vmor %vm655, %vm656
    %v658 = vsel %vm657, %v650, %v654
    %v659 = vand.u32 2147483647, %v648
    %vm660 = vcmp.eq.f32.partialorder %v659, 8.507059e+37
    %v661 = vand.u32 %v648, 2147483648
    %v662 = vor.u32 1.1754944e-38, %v661
    %v663 = vsel %vm660, %v662, %v658
    %v664 = vmul.f32 1.0, %v663
    %v665 = vrcp.pop %v649
    %v666 = vmul.f32 %v649, %v665
    %v667 = vsub.f32 1.0, %v666
    %v668 = vmul.f32 %v665, %v667
    %v669 = vadd.f32 %v665, %v668
    %vm670 = vweird.f32 %v649
    %vm671 = vweird.f32 %v665
    %vm672 = vmor %vm670, %vm671
    %v673 = vsel %vm672, %v665, %v669
    %v674 = vand.u32 2147483647, %v649
    %vm675 = vcmp.eq.f32.partialorder %v674, 8.507059e+37
    %v676 = vand.u32 %v649, 2147483648
    %v677 = vor.u32 1.1754944e-38, %v676
    %v678 = vsel %vm675, %v677, %v673
    %v679 = vmul.f32 1.0, %v678
    %v680 = vrot.slane %v507, 6
    %v682 = vmul.f32 %v664, %v680
    %v683 = vsub.f32 1.0, %v664
    %685 = vrot.lane.b32.xlu0 %v640, 32
    %v686 = vpop.permute.xlu0 %685
    %v688 = vmul.f32 %v683, %v686
    %v689 = vadd.f32 %v682, %v688
    %691 = vrot.lane.b32.xlu0 %v689, 32
    %v692 = vpop.permute.xlu0 %691
    %v694 = vmul.f32 %v664, %v692
    %v695 = vrot.slane %v689, 6
    %v697 = vmul.f32 %v664, %v695
    %v698 = vadd.f32 %v697, %v688
    %700 = vrot.lane.b32.xlu0 %v698, 32
    %v701 = vpop.permute.xlu0 %700
    %v703 = vmul.f32 %v664, %v701
    %v704 = vrot.slane %v698, 6
    %v706 = vmul.f32 %v664, %v704
    %v707 = vadd.f32 %v706, %v688
    %709 = vrot.lane.b32.xlu0 %v707, 32
    %v710 = vpop.permute.xlu0 %709
    %v712 = vmul.f32 %v664, %v710
    %v713 = vrot.slane %v707, 6
    %v715 = vmul.f32 %v664, %v713
    %v716 = vadd.f32 %v715, %v688
    %718 = vrot.lane.b32.xlu0 %v716, 32
    %v719 = vpop.permute.xlu0 %718
    %v721 = vmul.f32 %v664, %v719
    %v722 = vrot.slane %v716, 6
    %v724 = vmul.f32 %v679, %v722
    %v725 = vsub.f32 1.0, %v679
    %727 = vrot.lane.b32.xlu0 %v641, 32
    %v728 = vpop.permute.xlu0 %727
    %v730 = vmul.f32 %v725, %v728
    %v731 = vadd.f32 %v724, %v730
    %733 = vrot.lane.b32.xlu0 %v731, 32
    %v734 = vpop.permute.xlu0 %733
    %v736 = vmul.f32 %v679, %v734
    %v737 = vrot.slane %v731, 6
    %v739 = vmul.f32 %v679, %v737
    %v740 = vadd.f32 %v739, %v730
    %742 = vrot.lane.b32.xlu0 %v740, 32
    %v743 = vpop.permute.xlu0 %742
    %v745 = vmul.f32 %v679, %v743
    %v746 = vrot.slane %v740, 6
    %v748 = vmul.f32 %v679, %v746
    %v749 = vadd.f32 %v748, %v730
    %751 = vrot.lane.b32.xlu0 %v749, 32
    %v752 = vpop.permute.xlu0 %751
    %v754 = vmul.f32 %v679, %v752
    %v755 = vrot.slane %v749, 6
    %v757 = vmul.f32 %v679, %v755
    %v758 = vadd.f32 %v757, %v730
    %760 = vrot.lane.b32.xlu0 %v758, 32
    %v761 = vpop.permute.xlu0 %760
    %v763 = vmul.f32 %v679, %v761
    %v764 = vsel %vm261, %v694, %v703
    %v765 = vsel %vm263, %v764, %v712
    %v766 = vsel %vm265, %v765, %v721
    %v767 = vsel %vm261, %v736, %v745
    %v768 = vsel %vm263, %v767, %v754
    %v769 = vsel %vm265, %v768, %v763
    %v770 = vpack.c.bf16 %v769, %v766
    %v772 = vrot.slane %v694, 6
    %773 = vrot.lane.b32.xlu0 %v772, 64
    %v774 = vpop.permute.xlu0 %773
    %v777 = vrot.slane %v703, 6
    %778 = vrot.lane.b32.xlu0 %v777, 64
    %v779 = vpop.permute.xlu0 %778
    %v782 = vrot.slane %v712, 6
    %783 = vrot.lane.b32.xlu0 %v782, 64
    %v784 = vpop.permute.xlu0 %783
    %v787 = vrot.slane %v721, 6
    %788 = vrot.lane.b32.xlu0 %v787, 64
    %v789 = vpop.permute.xlu0 %788
    %v792 = vrot.slane %v736, 6
    %793 = vrot.lane.b32.xlu0 %v792, 64
    %v794 = vpop.permute.xlu0 %793
    %v797 = vrot.slane %v745, 6
    %798 = vrot.lane.b32.xlu0 %v797, 64
    %v799 = vpop.permute.xlu0 %798
    %v802 = vrot.slane %v754, 6
    %803 = vrot.lane.b32.xlu0 %v802, 64
    %v804 = vpop.permute.xlu0 %803
    %v806 = vsel %vm261, 0.0, %v774
    %v807 = vsel %vm263, %v806, %v779
    %v808 = vsel %vm265, %v807, %v784
    %v809 = vsel %vm261, %v789, %v794
    %v810 = vsel %vm263, %v809, %v799
    %v811 = vsel %vm265, %v810, %v804
    %v812 = vpack.c.bf16 %v811, %v808
    %s813 = scalar_lea.vmem [#allocation5], 32
    %v814 = vld [vmem:[%s813] sm:$0xf]
    %v815 = vld [vmem:[%s813 + $0x4] sm:$0xf]
    %v816 = vld [vmem:[%s813 + $0x8] sm:$0xf]
    %v817 = vld [vmem:[%s813 + $0xc] sm:$0xf]
    %s818 = scalar_lea.vmem [#allocation7], 32
    %v819 = vld [vmem:[%s818] sm:$0xf]
    %v820 = vld [vmem:[%s818 + $0x4] sm:$0xf]
    %v821 = vld [vmem:[%s818 + $0x8] sm:$0xf]
    %v822 = vld [vmem:[%s818 + $0xc] sm:$0xf]
    %824 = vrot.lane.b32.xlu0 %v770, 64
    %v825 = vpop.permute.xlu0 %824
    %v830 = vunpack.c.l.b16 %v819
    %v831 = vunpack.c.l.b16 %v820
    %v832 = vunpack.c.l.b16 %v821
    %v833 = vunpack.c.l.b16 %v822
    %v834 = vpack.c.b16 %v831, %v830
    %v835 = vpack.c.b16 %v833, %v832
    %v839 = vsel %vm336, %v825, 0
    %841 = vmatpush.bf16.msra.mxu0 0
    %842 = vmatpush.bf16.msra.mxu0 0
    %843 = vmatpush.bf16.msra.mxu0 0
    %844 = vmatpush.bf16.msra.mxu0 0
    %845 = vmatpush.bf16.msra.mxu0 0
    %846 = vmatpush.bf16.msra.mxu0 0
    %847 = vmatpush.bf16.msra.mxu0 %v835
    %848 = vmatpush.bf16.msra.mxu0 %v834
    %849 = vmatmul.bf16.gmra.mxu0 %v839
    %v850 = vpop.f32.mrf.mxu0
    %v851 = vadd.f32 0.0, %v850
    %v852 = vpop.f32.mrf.mxu0
    %v853 = vadd.f32 0.0, %v852
    %854 = vdwg.mxu0
    %v859 = vunpack.c.l.b16 %v814
    %v860 = vunpack.c.l.b16 %v815
    %v861 = vunpack.c.l.b16 %v816
    %v862 = vunpack.c.l.b16 %v817
    %v863 = vpack.c.b16 %v860, %v859
    %v864 = vpack.c.b16 %v862, %v861
    %v868 = vsel %vm336, %v812, 0
    %870 = vmatpush.bf16.msra.mxu0 0
    %871 = vmatpush.bf16.msra.mxu0 0
    %872 = vmatpush.bf16.msra.mxu0 0
    %873 = vmatpush.bf16.msra.mxu0 0
    %874 = vmatpush.bf16.msra.mxu0 0
    %875 = vmatpush.bf16.msra.mxu0 0
    %876 = vmatpush.bf16.msra.mxu0 %v864
    %877 = vmatpush.bf16.msra.mxu0 %v863
    %878 = vmatmul.bf16.gmra.mxu0 %v868
    %v879 = vpop.f32.mrf.mxu0
    %v880 = vadd.f32 %v851, %v879
    %v881 = vpop.f32.mrf.mxu0
    %v882 = vadd.f32 %v853, %v881
    %883 = vdwg.mxu0
    %s884 = scalar_lea.vmem %s5, 2
    %v885 = vld [vmem:[%s884] sm:$0x1]
    %v887 = vperm.slane %v885, 0
    %v889 = vadd.f32 %v880, %v887
    %v890 = vadd.f32 %v882, %v887
    %v891 = vtanh.pop %v889
    %v892 = vtanh.pop %v890
    %v893 = vxor.u32 %v889, 2147483648
    %v894 = vxor.u32 %v890, 2147483648
    %v895 = vmul.f32 %v893, 1.442695
    %v896 = vpow.pop %v895
    %v897 = vmul.f32 %v894, 1.442695
    %v898 = vpow.pop %v897
    %v899 = vadd.f32 %v896, 1.0
    %v900 = vadd.f32 %v898, 1.0
    %v901 = vrcp.pop %v899
    %v902 = vmul.f32 %v899, %v901
    %v903 = vsub.f32 1.0, %v902
    %v904 = vmul.f32 %v901, %v903
    %v905 = vadd.f32 %v901, %v904
    %vm906 = vweird.f32 %v899
    %vm907 = vweird.f32 %v901
    %vm908 = vmor %vm906, %vm907
    %v909 = vsel %vm908, %v901, %v905
    %v910 = vand.u32 2147483647, %v899
    %vm911 = vcmp.eq.f32.partialorder %v910, 8.507059e+37
    %v912 = vand.u32 %v899, 2147483648
    %v913 = vor.u32 1.1754944e-38, %v912
    %v914 = vsel %vm911, %v913, %v909
    %v915 = vmul.f32 1.0, %v914
    %v916 = vrcp.pop %v900
    %v917 = vmul.f32 %v900, %v916
    %v918 = vsub.f32 1.0, %v917
    %v919 = vmul.f32 %v916, %v918
    %v920 = vadd.f32 %v916, %v919
    %vm921 = vweird.f32 %v900
    %vm922 = vweird.f32 %v916
    %vm923 = vmor %vm921, %vm922
    %v924 = vsel %vm923, %v916, %v920
    %v925 = vand.u32 2147483647, %v900
    %vm926 = vcmp.eq.f32.partialorder %v925, 8.507059e+37
    %v927 = vand.u32 %v900, 2147483648
    %v928 = vor.u32 1.1754944e-38, %v927
    %v929 = vsel %vm926, %v928, %v924
    %v930 = vmul.f32 1.0, %v929
    %v931 = vrot.slane %v758, 6
    %v933 = vmul.f32 %v915, %v931
    %v934 = vsub.f32 1.0, %v915
    %936 = vrot.lane.b32.xlu0 %v891, 32
    %v937 = vpop.permute.xlu0 %936
    %v939 = vmul.f32 %v934, %v937
    %v940 = vadd.f32 %v933, %v939
    %v942 = vrot.slane %v940, 6
    %v944 = vmul.f32 %v915, %v942
    %v945 = vadd.f32 %v944, %v939
    %v947 = vrot.slane %v945, 6
    %v949 = vmul.f32 %v915, %v947
    %v950 = vadd.f32 %v949, %v939
    %v952 = vrot.slane %v950, 6
    %v954 = vmul.f32 %v915, %v952
    %v955 = vadd.f32 %v954, %v939
    %v957 = vrot.slane %v955, 6
    %v959 = vmul.f32 %v930, %v957
    %v960 = vsub.f32 1.0, %v930
    %962 = vrot.lane.b32.xlu0 %v892, 32
    %v963 = vpop.permute.xlu0 %962
    %v965 = vmul.f32 %v960, %v963
    %v966 = vadd.f32 %v959, %v965
    %v968 = vrot.slane %v966, 6
    %v970 = vmul.f32 %v930, %v968
    %v971 = vadd.f32 %v970, %v965
    %v973 = vrot.slane %v971, 6
    %v975 = vmul.f32 %v930, %v973
    %v976 = vadd.f32 %v975, %v965
    %v978 = vrot.slane %v976, 6
    %v980 = vmul.f32 %v930, %v978
    %v981 = vadd.f32 %v980, %v965
    %983 = vrot.lane.b32.xlu0 %v981, 32
    %v984 = vpop.permute.xlu0 %983
    %v986 = vmul.f32 %v930, %v984
    %v987 = vpack.c.bf16 %v986, %v986
    %v988 = vld [vmem:[%s6] sm:$0xf]
    %v989 = vld [vmem:[%s6 + $0x4] sm:$0xf]
    %v990 = vld [vmem:[%s6 + $0x8] sm:$0xf]
    %v991 = vld [vmem:[%s6 + $0xc] sm:$0xf]
    %v992 = vld [vmem:[%s7] sm:$0x1]
    %v994 = vperm.slane %v992, 0
    %v997 = vrot.slane %v987, 3
    %998 = vrot.lane.b32.xlu0 %v997, 64
    %v999 = vpop.permute.xlu0 %998
    %v1004 = vunpack.c.l.b16 %v988
    %v1005 = vunpack.c.l.b16 %v989
    %v1006 = vunpack.c.l.b16 %v990
    %v1007 = vunpack.c.l.b16 %v991
    %v1008 = vpack.c.b16 %v1005, %v1004
    %v1009 = vpack.c.b16 %v1007, %v1006
    %v1013 = vsel %vm336, %v999, 0
    %1015 = vmatpush.bf16.msra.mxu0 0
    %1016 = vmatpush.bf16.msra.mxu0 0
    %1017 = vmatpush.bf16.msra.mxu0 0
    %1018 = vmatpush.bf16.msra.mxu0 0
    %1019 = vmatpush.bf16.msra.mxu0 0
    %1020 = vmatpush.bf16.msra.mxu0 0
    %1021 = vmatpush.bf16.msra.mxu0 %v1009
    %1022 = vmatpush.bf16.msra.mxu0 %v1008
    %1023 = vmatmul.bf16.gmra.mxu0 %v1013
    %v1024 = vpop.f32.mrf.mxu0
    %v1025 = vadd.f32 %v994, %v1024
    %v1026 = vpop.f32.mrf.mxu0
    %1027 = vdwg.mxu0
    %vm1028 = vcmask 74752
    %1029 = vst.msk [vmem:[#allocation8] sm:$0x3] %vm1028, %v1025
    // Predicated region
    $region46: #{tpu_custom_call.1} parent=1 // pred_check
      _
    $region47: #{tpu_custom_call.1} parent=1 // pred_check_branch
      %1031 = sbr.rel (0) target = $region49
    $region48: #{tpu_custom_call.1} parent=1 // pred_region
      %1033 = vsyncadd [#allocation4], 0
      %s1035 = sshll.u32 [#allocation8], 4
      %s1036 = int_to_ptr.vmem [resolvable:$true] %s1035
      %s1037 = sshll.u32 %s8, 4
      %s1038 = int_to_ptr.hbm [resolvable:$true] %s1037
      %1040 = dma.vmem_to_hbm [thread:$0]  %s1036, 32, %s1038, [#allocation4]
    $region49: #{tpu_custom_call.1} parent=1 // pred_fallthru
      _
    // Predicated region
    $region50: #{tpu_custom_call.1} parent=1 // pred_check
      _
    $region51: #{tpu_custom_call.1} parent=1 // pred_check_branch
      %1042 = sbr.rel (0) target = $region53
    $region52: #{tpu_custom_call.1} parent=1 // pred_region
      %1044 = dma.done [#allocation4], 32
    $region53: #{tpu_custom_call.1} parent=1 // pred_fallthru
      _
    %1045 = vsyncpa [#allocation3], 1
    %1046 = vsyncpa [#allocation6], 1
    %1047 = vsyncpa [#allocation4], 1

</llo_original>
